<compile_context>
chip_gen: v7x
topology: tpu7x:2x2x1
jax: 0.10.0
libtpu: 0.0.40
codegen_flags: <defaults>
</compile_context>

<pallas_src>
import functools

import jax
import jax.numpy as jnp
from jax.experimental import pallas as pl
from jax.experimental.pallas import tpu as pltpu

_LANE = 128  # pad last dims (and the node dim) to multiples of this


def _round_up(n, m):
    return ((n + m - 1) // m) * m


# ----------------------------- fused Pallas kernel --------------------------

def _appnp_fused_kernel(*refs, n_layers, k):
    # refs = (x, adj_hat, w0, b0, ..., w_{L-1}, b_{L-1}, out); all VMEM-resident.
    x_ref, adj_ref = refs[0], refs[1]
    out_ref = refs[-1]
    wb_refs = refs[2:-1]

    # --- MLP: relu(x @ W + b) after EVERY linear (matches the torch module).
    # Kept in f32: its FLOP count is tiny next to the k-step propagation and
    # this keeps the propagation input exact.
    h = x_ref[...]
    for i in range(n_layers):
        w = wb_refs[2 * i][...]
        b = wb_refs[2 * i + 1][...]
        h = jnp.maximum(
            jnp.dot(h, w, preferred_element_type=jnp.float32) + b, 0.0
        )

    # --- Propagation.  adj_hat = (1-alpha)*adj + alpha*I was folded once at
    # setup (bf16), so each step is a single bf16 MXU matmul with f32
    # accumulation:  h <- adj_hat @ h  ==  (1-alpha)*adj@h + alpha*h.
    adj_hat = adj_ref[...]                      # bf16 [N_p, N_p]
    for _ in range(k):                          # k small & static -> unroll
        h = jnp.dot(adj_hat, h.astype(jnp.bfloat16),
                    preferred_element_type=jnp.float32)

    out_ref[...] = h


# ----------------------------- one-time setup --------------------------------

def appnp_prepare(adj, params, *, alpha):
    """One-time per-graph / per-model setup, OUTSIDE the per-call path.

    * folds (1-alpha)*adj + alpha*I into a single bf16 `adj_hat`,
    * zero-pads adj_hat / W / b to lane-dense (multiples of 128) shapes.

    Zero-padded W columns + zero-padded b keep padded feature lanes exactly 0
    after ReLU; zero-padded adj_hat rows/cols keep padded node rows from ever
    mixing into real rows.  Only x needs per-call padding afterwards.
    """
    n = adj.shape[0]
    n_layers = len(params)
    feats = [params[0][0].shape[0]] + [w.shape[1] for w, _ in params]

    n_p = _round_up(n, _LANE)
    feats_p = [_round_up(f, _LANE) for f in feats]

    adj_hat = (1.0 - alpha) * adj + alpha * jnp.eye(n, dtype=jnp.float32)
    adj_hat_p = (
        jnp.zeros((n_p, n_p), jnp.float32).at[:n, :n].set(adj_hat)
    ).astype(jnp.bfloat16)

    wb_p = []
    for i, (w, b) in enumerate(params):
        fi, fo = w.shape
        w_p = jnp.zeros((feats_p[i], feats_p[i + 1]), jnp.float32)
        w_p = w_p.at[:fi, :fo].set(w)
        b_p = jnp.zeros((1, feats_p[i + 1]), jnp.float32).at[:, :fo].set(b)
        wb_p += [w_p, b_p]

    meta = dict(n=n, n_p=n_p, feats=tuple(feats), feats_p=tuple(feats_p),
                n_layers=n_layers)
    return adj_hat_p, tuple(wb_p), meta


# ----------------------------- forward (per-call) ----------------------------

def appnp_forward(x, adj_hat_p, wb_p, meta, *, k):
    n, n_p = meta["n"], meta["n_p"]
    feats, feats_p = meta["feats"], meta["feats_p"]
    n_layers = meta["n_layers"]
    fin, fin_p = feats[0], feats_p[0]
    fout, fout_p = feats[-1], feats_p[-1]

    # Only x is padded per call.  Padded node rows of h are NOT zero after the
    # MLP (relu(b) != 0), but they never leak into real rows (padded adj_hat
    # columns are 0), are zeroed by the first propagation step (padded adj_hat
    # rows are 0), and are sliced off below.
    if (n, fin) == (n_p, fin_p):
        x_p = x.astype(jnp.float32)
    else:
        x_p = jnp.zeros((n_p, fin_p), jnp.float32).at[:n, :fin].set(x)

    args = (x_p, adj_hat_p) + tuple(wb_p)

    # Advisory cost estimate for XLA's scheduler.
    flops = 0
    for i in range(n_layers):
        flops += 2 * n_p * feats_p[i] * feats_p[i + 1]
    flops += k * 2 * n_p * n_p * fout_p
    in_bytes = sum(int(a.size) * a.dtype.itemsize for a in args)
    out_bytes = n_p * fout_p * 4
    bytes_accessed = in_bytes + out_bytes

    # Scoped-VMEM limit sized to the resident footprint with generous headroom
    # (default 16/32 MiB would otherwise reject larger graphs long before the
    # physical 64/128 MiB is exhausted).
    vmem_limit = int(min(2 * (in_bytes + out_bytes) + (8 << 20), 120 << 20))

    kernel = functools.partial(_appnp_fused_kernel, n_layers=n_layers, k=k)

    out_p = pl.pallas_call(
        kernel,
        out_shape=jax.ShapeDtypeStruct((n_p, fout_p), jnp.float32),
        in_specs=[pl.BlockSpec(memory_space=pltpu.MemorySpace.VMEM)]
        * len(args),
        out_specs=pl.BlockSpec(memory_space=pltpu.MemorySpace.VMEM),
        compiler_params=pltpu.CompilerParams(vmem_limit_bytes=vmem_limit),
        cost_estimate=pl.CostEstimate(
            flops=flops, transcendentals=0, bytes_accessed=bytes_accessed
        ),
    )(*args)

    # Slice real rows / real output features back out.
    return out_p[:n, :fout]


# ----------------------------- parameter init --------------------------------

def init_linear(key, fin, fout):
    # mirrors torch.nn.Linear default init: U(-1/sqrt(fin), 1/sqrt(fin))
    kw, kb = jax.random.split(key)
    bound = 1.0 / jnp.sqrt(jnp.float32(fin))
    w = jax.random.uniform(kw, (fin, fout), jnp.float32, -bound, bound)
    b = jax.random.uniform(kb, (1, fout), jnp.float32, -bound, bound)
    return w, b


# ----------------------------- reference (pure JAX, f32) ---------------------

def appnp_reference(x, adj, params, *, alpha, k):
    for w, b in params:
        x = jnp.maximum(x @ w + b, 0.0)
    for _ in range(k):
        x = (1.0 - alpha) * (adj @ x) + alpha * x
    return x


# ----------------------------- main -------------------------------------------

if __name__ == "__main__":
    # Small, module-consistent shapes:
    #   N=64 nodes, in_features=32, hidden_features=32, out_features=8,
    #   n_layers=2, alpha=0.01, k=10
    N, IN_F, HID_F, OUT_F = 64, 32, 32, 8
    N_LAYERS = 2
    ALPHA, K = 0.01, 10

    key = jax.random.PRNGKey(0)
    kx, kadj, kp1, kp2 = jax.random.split(key, 4)

    x = jax.random.normal(kx, (N, IN_F), jnp.float32)

    # Dense "sparse" adjacency: random graph + self loops, row-normalized
    # (stand-in for GCNAdjNorm output).
    a = (jax.random.uniform(kadj, (N, N)) < 0.1).astype(jnp.float32)
    a = a + jnp.eye(N, dtype=jnp.float32)
    adj = a / jnp.sum(a, axis=1, keepdims=True)

    feats = [IN_F] + [HID_F] * (N_LAYERS - 1) + [OUT_F]
    keys = [kp1, kp2]
    params = [
        init_linear(keys[i], feats[i], feats[i + 1]) for i in range(N_LAYERS)
    ]

    # One-time setup: fold (1-alpha)A + alpha*I, pad, cast adj_hat to bf16.
    adj_hat_p, wb_p, meta = appnp_prepare(adj, params, alpha=ALPHA)

    fwd = jax.jit(functools.partial(appnp_forward, meta=meta, k=K))
    out = fwd(x, adj_hat_p, wb_p)
    out = jax.block_until_ready(out)

    ref = appnp_reference(x, adj, params, alpha=ALPHA, k=K)
    assert out.shape == (N, OUT_F)
    # Propagation runs bf16 on the MXU (f32 accumulation), so compare against
    # the f32 reference with a bf16-appropriate tolerance.
    max_err = float(jnp.max(jnp.abs(out - ref)))
    assert jnp.allclose(out, ref, atol=3e-2, rtol=3e-2), (
        f"mismatch vs reference, max abs err = {max_err}"
    )

    print("KERNEL_OK")
</pallas_src>

<mosaic_0001>
module attributes {stable_mosaic.version = 11 : i64} {
  func.func @_appnp_fused_kernel(%arg0: memref<128x128xf32, #tpu.memory_space<vmem>>, %arg1: memref<128x128xbf16, #tpu.memory_space<vmem>>, %arg2: memref<128x128xf32, #tpu.memory_space<vmem>>, %arg3: memref<1x128xf32, #tpu.memory_space<vmem>>, %arg4: memref<128x128xf32, #tpu.memory_space<vmem>>, %arg5: memref<1x128xf32, #tpu.memory_space<vmem>>, %arg6: memref<128x128xf32, #tpu.memory_space<vmem>>) attributes {dimension_semantics = [], scalar_prefetch = 0 : i64, scratch_operands = 0 : i64, tpu.core_type = #tpu.core_type<tc>} {
    %c0 = arith.constant 0 : index
    %c0_0 = arith.constant 0 : index
    %0 = vector.load %arg0[%c0, %c0_0] : memref<128x128xf32, #tpu.memory_space<vmem>>, vector<128x128xf32>
    %c0_1 = arith.constant 0 : index
    %c0_2 = arith.constant 0 : index
    %1 = vector.load %arg2[%c0_1, %c0_2] : memref<128x128xf32, #tpu.memory_space<vmem>>, vector<128x128xf32>
    %c0_3 = arith.constant 0 : index
    %c0_4 = arith.constant 0 : index
    %2 = vector.load %arg3[%c0_3, %c0_4] : memref<1x128xf32, #tpu.memory_space<vmem>>, vector<1x128xf32>
    %cst = arith.constant dense<0.000000e+00> : vector<128x128xf32>
    %3 = tpu.matmul %0, %1, %cst {dimension_numbers = #tpu.dot_dimension_numbers<[1], [0], [0], [1], [0, 0, 1, 1], [], []>} : vector<128x128xf32>, vector<128x128xf32>, vector<128x128xf32> -> vector<128x128xf32>
    %4 = vector.broadcast %2 : vector<1x128xf32> to vector<128x128xf32>
    %5 = arith.addf %3, %4 : vector<128x128xf32>
    %cst_5 = arith.constant 0.000000e+00 : f32
    %6 = vector.broadcast %cst_5 : f32 to vector<128x128xf32>
    %7 = arith.maximumf %5, %6 : vector<128x128xf32>
    %c0_6 = arith.constant 0 : index
    %c0_7 = arith.constant 0 : index
    %8 = vector.load %arg4[%c0_6, %c0_7] : memref<128x128xf32, #tpu.memory_space<vmem>>, vector<128x128xf32>
    %c0_8 = arith.constant 0 : index
    %c0_9 = arith.constant 0 : index
    %9 = vector.load %arg5[%c0_8, %c0_9] : memref<1x128xf32, #tpu.memory_space<vmem>>, vector<1x128xf32>
    %cst_10 = arith.constant dense<0.000000e+00> : vector<128x128xf32>
    %10 = tpu.matmul %7, %8, %cst_10 {dimension_numbers = #tpu.dot_dimension_numbers<[1], [0], [0], [1], [0, 0, 1, 1], [], []>} : vector<128x128xf32>, vector<128x128xf32>, vector<128x128xf32> -> vector<128x128xf32>
    %11 = vector.broadcast %9 : vector<1x128xf32> to vector<128x128xf32>
    %12 = arith.addf %10, %11 : vector<128x128xf32>
    %cst_11 = arith.constant 0.000000e+00 : f32
    %13 = vector.broadcast %cst_11 : f32 to vector<128x128xf32>
    %14 = arith.maximumf %12, %13 : vector<128x128xf32>
    %c0_12 = arith.constant 0 : index
    %c0_13 = arith.constant 0 : index
    %15 = vector.load %arg1[%c0_12, %c0_13] : memref<128x128xbf16, #tpu.memory_space<vmem>>, vector<128x128xbf16>
    %16 = arith.truncf %14 : vector<128x128xf32> to vector<128x128xbf16>
    %cst_14 = arith.constant dense<0.000000e+00> : vector<128x128xf32>
    %17 = tpu.matmul %15, %16, %cst_14 {dimension_numbers = #tpu.dot_dimension_numbers<[1], [0], [0], [1], [0, 0, 1, 1], [], []>} : vector<128x128xbf16>, vector<128x128xbf16>, vector<128x128xf32> -> vector<128x128xf32>
    %18 = arith.truncf %17 : vector<128x128xf32> to vector<128x128xbf16>
    %cst_15 = arith.constant dense<0.000000e+00> : vector<128x128xf32>
    %19 = tpu.matmul %15, %18, %cst_15 {dimension_numbers = #tpu.dot_dimension_numbers<[1], [0], [0], [1], [0, 0, 1, 1], [], []>} : vector<128x128xbf16>, vector<128x128xbf16>, vector<128x128xf32> -> vector<128x128xf32>
    %20 = arith.truncf %19 : vector<128x128xf32> to vector<128x128xbf16>
    %cst_16 = arith.constant dense<0.000000e+00> : vector<128x128xf32>
    %21 = tpu.matmul %15, %20, %cst_16 {dimension_numbers = #tpu.dot_dimension_numbers<[1], [0], [0], [1], [0, 0, 1, 1], [], []>} : vector<128x128xbf16>, vector<128x128xbf16>, vector<128x128xf32> -> vector<128x128xf32>
    %22 = arith.truncf %21 : vector<128x128xf32> to vector<128x128xbf16>
    %cst_17 = arith.constant dense<0.000000e+00> : vector<128x128xf32>
    %23 = tpu.matmul %15, %22, %cst_17 {dimension_numbers = #tpu.dot_dimension_numbers<[1], [0], [0], [1], [0, 0, 1, 1], [], []>} : vector<128x128xbf16>, vector<128x128xbf16>, vector<128x128xf32> -> vector<128x128xf32>
    %24 = arith.truncf %23 : vector<128x128xf32> to vector<128x128xbf16>
    %cst_18 = arith.constant dense<0.000000e+00> : vector<128x128xf32>
    %25 = tpu.matmul %15, %24, %cst_18 {dimension_numbers = #tpu.dot_dimension_numbers<[1], [0], [0], [1], [0, 0, 1, 1], [], []>} : vector<128x128xbf16>, vector<128x128xbf16>, vector<128x128xf32> -> vector<128x128xf32>
    %26 = arith.truncf %25 : vector<128x128xf32> to vector<128x128xbf16>
    %cst_19 = arith.constant dense<0.000000e+00> : vector<128x128xf32>
    %27 = tpu.matmul %15, %26, %cst_19 {dimension_numbers = #tpu.dot_dimension_numbers<[1], [0], [0], [1], [0, 0, 1, 1], [], []>} : vector<128x128xbf16>, vector<128x128xbf16>, vector<128x128xf32> -> vector<128x128xf32>
    %28 = arith.truncf %27 : vector<128x128xf32> to vector<128x128xbf16>
    %cst_20 = arith.constant dense<0.000000e+00> : vector<128x128xf32>
    %29 = tpu.matmul %15, %28, %cst_20 {dimension_numbers = #tpu.dot_dimension_numbers<[1], [0], [0], [1], [0, 0, 1, 1], [], []>} : vector<128x128xbf16>, vector<128x128xbf16>, vector<128x128xf32> -> vector<128x128xf32>
    %30 = arith.truncf %29 : vector<128x128xf32> to vector<128x128xbf16>
    %cst_21 = arith.constant dense<0.000000e+00> : vector<128x128xf32>
    %31 = tpu.matmul %15, %30, %cst_21 {dimension_numbers = #tpu.dot_dimension_numbers<[1], [0], [0], [1], [0, 0, 1, 1], [], []>} : vector<128x128xbf16>, vector<128x128xbf16>, vector<128x128xf32> -> vector<128x128xf32>
    %32 = arith.truncf %31 : vector<128x128xf32> to vector<128x128xbf16>
    %cst_22 = arith.constant dense<0.000000e+00> : vector<128x128xf32>
    %33 = tpu.matmul %15, %32, %cst_22 {dimension_numbers = #tpu.dot_dimension_numbers<[1], [0], [0], [1], [0, 0, 1, 1], [], []>} : vector<128x128xbf16>, vector<128x128xbf16>, vector<128x128xf32> -> vector<128x128xf32>
    %34 = arith.truncf %33 : vector<128x128xf32> to vector<128x128xbf16>
    %cst_23 = arith.constant dense<0.000000e+00> : vector<128x128xf32>
    %35 = tpu.matmul %15, %34, %cst_23 {dimension_numbers = #tpu.dot_dimension_numbers<[1], [0], [0], [1], [0, 0, 1, 1], [], []>} : vector<128x128xbf16>, vector<128x128xbf16>, vector<128x128xf32> -> vector<128x128xf32>
    %c0_24 = arith.constant 0 : index
    %c0_25 = arith.constant 0 : index
    %36 = vector.load %arg6[%c0_24, %c0_25] : memref<128x128xf32, #tpu.memory_space<vmem>>, vector<128x128xf32>
    tpu.vector_store %arg6[%c0_24, %c0_25], %35 {strides = array<i32>} : memref<128x128xf32, #tpu.memory_space<vmem>>, vector<128x128xf32>,
    return
  }
}

</mosaic_0001>

<llo_original>
// kernel: appnp_forward.1
$region0: #{appnp_forward.1}
  #allocation0 [shape = 'u32[]', space=smem, size = 0x4, offset = 0x4, fixed_abs, tag = 'smem constant byte address 0x4 - core index']
  #allocation1 [shape = 'u32[144,128]{1,0:T(1,128)}', space=vmem, size = 0x12000, scoped, tag = 'internal scratch']
  %s0 = inlined_call_operand.vmem [shape: f32[128,128], index: 0, kind: input, shape index: {}]
  %s1 = inlined_call_operand.hbm [shape: bf16[128,128], index: 1, kind: input, shape index: {}]
  %s2 = inlined_call_operand.vmem [shape: f32[128,128], index: 2, kind: input, shape index: {}]
  %s3 = inlined_call_operand.vmem [shape: f32[1,128], index: 3, kind: input, shape index: {}]
  %s4 = inlined_call_operand.vmem [shape: f32[128,128], index: 4, kind: input, shape index: {}]
  %s5 = inlined_call_operand.vmem [shape: f32[1,128], index: 5, kind: input, shape index: {}]
  %s6 = inlined_call_operand.vmem [shape: f32[128,128], index: 6, kind: output, shape index: {}]
  %s7 = sld [smem:[#allocation0]]
  $region38: #{appnp_forward.1} parent=0
    _
  %s9 = ssub.s32 1, %s7
  %s10 = scalar_select 0, %s9, %s7
  $region1: #{appnp_forward.1} parent=0
    #allocation2 [shape = 'u8[32768]{0}', space=vmem, size = 0x8000, scoped, tag = 'input window, operand 1, single buffered']
    #allocation3 [shape = 's32[1]{0}', space=sflag, size = 0x4, scoped, tag = 'scoped memory for appnp_forward.1']
    %11 = vsyncpa [#allocation3], 0
    // Predicated region
    $region2: #{appnp_forward.1} parent=1 // pred_check
      _
    $region3: #{appnp_forward.1} parent=1 // pred_check_branch
      %13 = sbr.rel (0) target = $region5
    $region4: #{appnp_forward.1} parent=1 // pred_region
      _
    $region5: #{appnp_forward.1} parent=1 // pred_fallthru
      _
    // Predicated region
    $region6: #{appnp_forward.1} parent=1 // pred_check
      _
    $region7: #{appnp_forward.1} parent=1 // pred_check_branch
      %15 = sbr.rel (0) target = $region9
    $region8: #{appnp_forward.1} parent=1 // pred_region
      %s17 = ssub.s32 1024, 1024
      %18 = vsyncadd [#allocation3], %s17
      %s19 = sshll.u32 [#allocation2], 4
      %s20 = int_to_ptr.vmem [resolvable:$true] %s19
      %25 = dma.hbm_to_vmem [thread:$0]  %s1, 1024, %s20, [#allocation3], 64, 64, 4
    $region9: #{appnp_forward.1} parent=1 // pred_fallthru
      _
    // Predicated region
    $region10: #{appnp_forward.1} parent=1 // pred_check
      _
    $region11: #{appnp_forward.1} parent=1 // pred_check_branch
      %27 = sbr.rel (0) target = $region13
    $region12: #{appnp_forward.1} parent=1 // pred_region
      _
    $region13: #{appnp_forward.1} parent=1 // pred_fallthru
      _
    // Predicated region
    $region14: #{appnp_forward.1} parent=1 // pred_check
      _
    $region15: #{appnp_forward.1} parent=1 // pred_check_branch
      %29 = sbr.rel (0) target = $region17
    $region16: #{appnp_forward.1} parent=1 // pred_region
      _
    $region17: #{appnp_forward.1} parent=1 // pred_fallthru
      _
    // Predicated region
    $region18: #{appnp_forward.1} parent=1 // pred_check
      _
    $region19: #{appnp_forward.1} parent=1 // pred_check_branch
      %31 = sbr.rel (0) target = $region21
    $region20: #{appnp_forward.1} parent=1 // pred_region
      _
    $region21: #{appnp_forward.1} parent=1 // pred_fallthru
      _
    // Predicated region
    $region22: #{appnp_forward.1} parent=1 // pred_check
      _
    $region23: #{appnp_forward.1} parent=1 // pred_check_branch
      %33 = sbr.rel (0) target = $region25
    $region24: #{appnp_forward.1} parent=1 // pred_region
      _
    $region25: #{appnp_forward.1} parent=1 // pred_fallthru
      _
    // Predicated region
    $region26: #{appnp_forward.1} parent=1 // pred_check
      _
    $region27: #{appnp_forward.1} parent=1 // pred_check_branch
      %35 = sbr.rel (0) target = $region29
    $region28: #{appnp_forward.1} parent=1 // pred_region
      %36 = dma.done [#allocation3], 1024
    $region29: #{appnp_forward.1} parent=1 // pred_fallthru
      _
    %v38 = vld [vmem:[%s0] sm:$0xff]
    %v39 = vld [vmem:[%s0 + $0x8] sm:$0xff]
    %v40 = vld [vmem:[%s0 + $0x10] sm:$0xff]
    %v41 = vld [vmem:[%s0 + $0x18] sm:$0xff]
    %v42 = vld [vmem:[%s0 + $0x20] sm:$0xff]
    %v43 = vld [vmem:[%s0 + $0x28] sm:$0xff]
    %v44 = vld [vmem:[%s0 + $0x30] sm:$0xff]
    %v45 = vld [vmem:[%s0 + $0x38] sm:$0xff]
    %v46 = vld [vmem:[%s0 + $0x40] sm:$0xff]
    %v47 = vld [vmem:[%s0 + $0x48] sm:$0xff]
    %v48 = vld [vmem:[%s0 + $0x50] sm:$0xff]
    %v49 = vld [vmem:[%s0 + $0x58] sm:$0xff]
    %v50 = vld [vmem:[%s0 + $0x60] sm:$0xff]
    %v51 = vld [vmem:[%s0 + $0x68] sm:$0xff]
    %v52 = vld [vmem:[%s0 + $0x70] sm:$0xff]
    %v53 = vld [vmem:[%s0 + $0x78] sm:$0xff]
    %v54 = vld [vmem:[%s2] sm:$0xff]
    %v55 = vld [vmem:[%s2 + $0x8] sm:$0xff]
    %v56 = vld [vmem:[%s2 + $0x10] sm:$0xff]
    %v57 = vld [vmem:[%s2 + $0x18] sm:$0xff]
    %v58 = vld [vmem:[%s2 + $0x20] sm:$0xff]
    %v59 = vld [vmem:[%s2 + $0x28] sm:$0xff]
    %v60 = vld [vmem:[%s2 + $0x30] sm:$0xff]
    %v61 = vld [vmem:[%s2 + $0x38] sm:$0xff]
    %v62 = vld [vmem:[%s2 + $0x40] sm:$0xff]
    %v63 = vld [vmem:[%s2 + $0x48] sm:$0xff]
    %v64 = vld [vmem:[%s2 + $0x50] sm:$0xff]
    %v65 = vld [vmem:[%s2 + $0x58] sm:$0xff]
    %v66 = vld [vmem:[%s2 + $0x60] sm:$0xff]
    %v67 = vld [vmem:[%s2 + $0x68] sm:$0xff]
    %v68 = vld [vmem:[%s2 + $0x70] sm:$0xff]
    %v69 = vld [vmem:[%s2 + $0x78] sm:$0xff]
    %v70 = vld [vmem:[%s3] sm:$0x1]
    %v72 = vlaneseq
    %v73 = vshrl.u32 %v72, 7
    %v74 = vsub.s32 0, %v73
    %v75 = vrot.slane %v70, %v74
    %77 = vmatprep.subr.mxu0 0.0
    %78 = vmatpush1.msra.mxu0 %v54
    %79 = vmatprep.subr.mxu0 0.0
    %80 = vmatpush1.msra.mxu0 %v55
    %81 = vmatprep.subr.mxu0 0.0
    %82 = vmatpush1.msra.mxu0 %v56
    %83 = vmatprep.subr.mxu0 0.0
    %84 = vmatpush1.msra.mxu0 %v57
    %85 = vmatprep.subr.mxu0 0.0
    %86 = vmatpush1.msra.mxu0 %v58
    %87 = vmatprep.subr.mxu0 0.0
    %88 = vmatpush1.msra.mxu0 %v59
    %89 = vmatprep.subr.mxu0 0.0
    %90 = vmatpush1.msra.mxu0 %v60
    %91 = vmatprep.subr.mxu0 0.0
    %92 = vmatpush1.msra.mxu0 %v61
    %93 = vmatprep.subr.mxu0 0.0
    %94 = vmatpush1.msra.mxu0 %v62
    %95 = vmatprep.subr.mxu0 0.0
    %96 = vmatpush1.msra.mxu0 %v63
    %97 = vmatprep.subr.mxu0 0.0
    %98 = vmatpush1.msra.mxu0 %v64
    %99 = vmatprep.subr.mxu0 0.0
    %100 = vmatpush1.msra.mxu0 %v65
    %101 = vmatprep.subr.mxu0 0.0
    %102 = vmatpush1.msra.mxu0 %v66
    %103 = vmatprep.subr.mxu0 0.0
    %104 = vmatpush1.msra.mxu0 %v67
    %105 = vmatprep.subr.mxu0 0.0
    %106 = vmatpush1.msra.mxu0 %v68
    %107 = vmatprep.subr.mxu0 0.0
    %108 = vmatpush1.msra.mxu0 %v69
    %109 = vmatprep.subr.mxu0 0.0
    %110 = vmatpush1.msra.mxu0 0.0
    %111 = vmatprep.subr.mxu0 0.0
    %112 = vmatpush1.msra.mxu0 0.0
    %113 = vmatprep.subr.mxu0 0.0
    %114 = vmatpush1.msra.mxu0 0.0
    %115 = vmatprep.subr.mxu0 0.0
    %116 = vmatpush1.msra.mxu0 0.0
    %117 = vmatprep.subr.mxu0 0.0
    %118 = vmatpush1.msra.mxu0 0.0
    %119 = vmatprep.subr.mxu0 0.0
    %120 = vmatpush1.msra.mxu0 0.0
    %121 = vmatprep.subr.mxu0 0.0
    %122 = vmatpush1.msra.mxu0 0.0
    %123 = vmatprep.subr.mxu0 0.0
    %124 = vmatpush1.msra.mxu0 0.0
    %125 = vmatprep.subr.mxu0 0.0
    %126 = vmatpush1.msra.mxu0 0.0
    %127 = vmatprep.subr.mxu0 0.0
    %128 = vmatpush1.msra.mxu0 0.0
    %129 = vmatprep.subr.mxu0 0.0
    %130 = vmatpush1.msra.mxu0 0.0
    %131 = vmatprep.subr.mxu0 0.0
    %132 = vmatpush1.msra.mxu0 0.0
    %133 = vmatprep.subr.mxu0 0.0
    %134 = vmatpush1.msra.mxu0 0.0
    %135 = vmatprep.subr.mxu0 0.0
    %136 = vmatpush1.msra.mxu0 0.0
    %137 = vmatprep.subr.mxu0 0.0
    %138 = vmatpush1.msra.mxu0 0.0
    %139 = vmatprep.subr.mxu0 0.0
    %140 = vmatpush1.msra.mxu0 0.0
    %141 = vmatprep.mubr.f32.mxu0 0.0
    %142 = vmatmul.mubr.f32.gmra.mrb[0].mxu0 %v38
    %v143 = vpop.f32.mrb[0].mxu0
    %v144 = vadd.f32 %v75, %v143
    %v145 = vpop.f32.mrb[0].mxu0
    %146 = vmatprep.mubr.f32.mxu0 0.0
    %147 = vmatmul.mubr.f32.gmra.mrb[0].mxu0 %v39
    %v148 = vpop.f32.mrb[0].mxu0
    %v149 = vadd.f32 %v75, %v148
    %v150 = vpop.f32.mrb[0].mxu0
    %151 = vmatprep.mubr.f32.mxu0 0.0
    %152 = vmatmul.mubr.f32.gmra.mrb[0].mxu0 %v40
    %v153 = vpop.f32.mrb[0].mxu0
    %v154 = vadd.f32 %v75, %v153
    %v155 = vpop.f32.mrb[0].mxu0
    %156 = vmatprep.mubr.f32.mxu0 0.0
    %157 = vmatmul.mubr.f32.gmra.mrb[0].mxu0 %v41
    %v158 = vpop.f32.mrb[0].mxu0
    %v159 = vadd.f32 %v75, %v158
    %v160 = vpop.f32.mrb[0].mxu0
    %161 = vmatprep.mubr.f32.mxu0 0.0
    %162 = vmatmul.mubr.f32.gmra.mrb[0].mxu0 %v42
    %v163 = vpop.f32.mrb[0].mxu0
    %v164 = vadd.f32 %v75, %v163
    %v165 = vpop.f32.mrb[0].mxu0
    %166 = vmatprep.mubr.f32.mxu0 0.0
    %167 = vmatmul.mubr.f32.gmra.mrb[0].mxu0 %v43
    %v168 = vpop.f32.mrb[0].mxu0
    %v169 = vadd.f32 %v75, %v168
    %v170 = vpop.f32.mrb[0].mxu0
    %171 = vmatprep.mubr.f32.mxu0 0.0
    %172 = vmatmul.mubr.f32.gmra.mrb[0].mxu0 %v44
    %v173 = vpop.f32.mrb[0].mxu0
    %v174 = vadd.f32 %v75, %v173
    %v175 = vpop.f32.mrb[0].mxu0
    %176 = vmatprep.mubr.f32.mxu0 0.0
    %177 = vmatmul.mubr.f32.gmra.mrb[0].mxu0 %v45
    %v178 = vpop.f32.mrb[0].mxu0
    %v179 = vadd.f32 %v75, %v178
    %v180 = vpop.f32.mrb[0].mxu0
    %181 = vmatprep.mubr.f32.mxu0 0.0
    %182 = vmatmul.mubr.f32.gmra.mrb[0].mxu0 %v46
    %v183 = vpop.f32.mrb[0].mxu0
    %v184 = vadd.f32 %v75, %v183
    %v185 = vpop.f32.mrb[0].mxu0
    %186 = vmatprep.mubr.f32.mxu0 0.0
    %187 = vmatmul.mubr.f32.gmra.mrb[0].mxu0 %v47
    %v188 = vpop.f32.mrb[0].mxu0
    %v189 = vadd.f32 %v75, %v188
    %v190 = vpop.f32.mrb[0].mxu0
    %191 = vmatprep.mubr.f32.mxu0 0.0
    %192 = vmatmul.mubr.f32.gmra.mrb[0].mxu0 %v48
    %v193 = vpop.f32.mrb[0].mxu0
    %v194 = vadd.f32 %v75, %v193
    %v195 = vpop.f32.mrb[0].mxu0
    %196 = vmatprep.mubr.f32.mxu0 0.0
    %197 = vmatmul.mubr.f32.gmra.mrb[0].mxu0 %v49
    %v198 = vpop.f32.mrb[0].mxu0
    %v199 = vadd.f32 %v75, %v198
    %v200 = vpop.f32.mrb[0].mxu0
    %201 = vmatprep.mubr.f32.mxu0 0.0
    %202 = vmatmul.mubr.f32.gmra.mrb[0].mxu0 %v50
    %v203 = vpop.f32.mrb[0].mxu0
    %v204 = vadd.f32 %v75, %v203
    %v205 = vpop.f32.mrb[0].mxu0
    %206 = vmatprep.mubr.f32.mxu0 0.0
    %207 = vmatmul.mubr.f32.gmra.mrb[0].mxu0 %v51
    %v208 = vpop.f32.mrb[0].mxu0
    %v209 = vadd.f32 %v75, %v208
    %v210 = vpop.f32.mrb[0].mxu0
    %211 = vmatprep.mubr.f32.mxu0 0.0
    %212 = vmatmul.mubr.f32.gmra.mrb[0].mxu0 %v52
    %v213 = vpop.f32.mrb[0].mxu0
    %v214 = vadd.f32 %v75, %v213
    %v215 = vpop.f32.mrb[0].mxu0
    %216 = vmatprep.mubr.f32.mxu0 0.0
    %217 = vmatmul.mubr.f32.gmra.mrb[0].mxu0 %v53
    %v218 = vpop.f32.mrb[0].mxu0
    %v219 = vadd.f32 %v75, %v218
    %v220 = vpop.f32.mrb[0].mxu0
    %221 = vdwg.mxu0
    %v222 = vmax.f32 %v144, 0.0
    %v223 = vmax.f32 %v149, 0.0
    %v224 = vmax.f32 %v154, 0.0
    %v225 = vmax.f32 %v159, 0.0
    %v226 = vmax.f32 %v164, 0.0
    %v227 = vmax.f32 %v169, 0.0
    %v228 = vmax.f32 %v174, 0.0
    %v229 = vmax.f32 %v179, 0.0
    %v230 = vmax.f32 %v184, 0.0
    %v231 = vmax.f32 %v189, 0.0
    %v232 = vmax.f32 %v194, 0.0
    %v233 = vmax.f32 %v199, 0.0
    %v234 = vmax.f32 %v204, 0.0
    %v235 = vmax.f32 %v209, 0.0
    %v236 = vmax.f32 %v214, 0.0
    %v237 = vmax.f32 %v219, 0.0
    %v238 = vld [vmem:[%s4] sm:$0xff]
    %v239 = vld [vmem:[%s4 + $0x8] sm:$0xff]
    %v240 = vld [vmem:[%s4 + $0x10] sm:$0xff]
    %v241 = vld [vmem:[%s4 + $0x18] sm:$0xff]
    %v242 = vld [vmem:[%s4 + $0x20] sm:$0xff]
    %v243 = vld [vmem:[%s4 + $0x28] sm:$0xff]
    %v244 = vld [vmem:[%s4 + $0x30] sm:$0xff]
    %v245 = vld [vmem:[%s4 + $0x38] sm:$0xff]
    %v246 = vld [vmem:[%s4 + $0x40] sm:$0xff]
    %v247 = vld [vmem:[%s4 + $0x48] sm:$0xff]
    %v248 = vld [vmem:[%s4 + $0x50] sm:$0xff]
    %v249 = vld [vmem:[%s4 + $0x58] sm:$0xff]
    %v250 = vld [vmem:[%s4 + $0x60] sm:$0xff]
    %v251 = vld [vmem:[%s4 + $0x68] sm:$0xff]
    %v252 = vld [vmem:[%s4 + $0x70] sm:$0xff]
    %v253 = vld [vmem:[%s4 + $0x78] sm:$0xff]
    %v254 = vld [vmem:[%s5] sm:$0x1]
    %v256 = vlaneseq
    %v257 = vshrl.u32 %v256, 7
    %v258 = vsub.s32 0, %v257
    %v259 = vrot.slane %v254, %v258
    %261 = vmatprep.subr.mxu0 0.0
    %262 = vmatpush1.msra.mxu0 %v238
    %263 = vmatprep.subr.mxu0 0.0
    %264 = vmatpush1.msra.mxu0 %v239
    %265 = vmatprep.subr.mxu0 0.0
    %266 = vmatpush1.msra.mxu0 %v240
    %267 = vmatprep.subr.mxu0 0.0
    %268 = vmatpush1.msra.mxu0 %v241
    %269 = vmatprep.subr.mxu0 0.0
    %270 = vmatpush1.msra.mxu0 %v242
    %271 = vmatprep.subr.mxu0 0.0
    %272 = vmatpush1.msra.mxu0 %v243
    %273 = vmatprep.subr.mxu0 0.0
    %274 = vmatpush1.msra.mxu0 %v244
    %275 = vmatprep.subr.mxu0 0.0
    %276 = vmatpush1.msra.mxu0 %v245
    %277 = vmatprep.subr.mxu0 0.0
    %278 = vmatpush1.msra.mxu0 %v246
    %279 = vmatprep.subr.mxu0 0.0
    %280 = vmatpush1.msra.mxu0 %v247
    %281 = vmatprep.subr.mxu0 0.0
    %282 = vmatpush1.msra.mxu0 %v248
    %283 = vmatprep.subr.mxu0 0.0
    %284 = vmatpush1.msra.mxu0 %v249
    %285 = vmatprep.subr.mxu0 0.0
    %286 = vmatpush1.msra.mxu0 %v250
    %287 = vmatprep.subr.mxu0 0.0
    %288 = vmatpush1.msra.mxu0 %v251
    %289 = vmatprep.subr.mxu0 0.0
    %290 = vmatpush1.msra.mxu0 %v252
    %291 = vmatprep.subr.mxu0 0.0
    %292 = vmatpush1.msra.mxu0 %v253
    %293 = vmatprep.subr.mxu0 0.0
    %294 = vmatpush1.msra.mxu0 0.0
    %295 = vmatprep.subr.mxu0 0.0
    %296 = vmatpush1.msra.mxu0 0.0
    %297 = vmatprep.subr.mxu0 0.0
    %298 = vmatpush1.msra.mxu0 0.0
    %299 = vmatprep.subr.mxu0 0.0
    %300 = vmatpush1.msra.mxu0 0.0
    %301 = vmatprep.subr.mxu0 0.0
    %302 = vmatpush1.msra.mxu0 0.0
    %303 = vmatprep.subr.mxu0 0.0
    %304 = vmatpush1.msra.mxu0 0.0
    %305 = vmatprep.subr.mxu0 0.0
    %306 = vmatpush1.msra.mxu0 0.0
    %307 = vmatprep.subr.mxu0 0.0
    %308 = vmatpush1.msra.mxu0 0.0
    %309 = vmatprep.subr.mxu0 0.0
    %310 = vmatpush1.msra.mxu0 0.0
    %311 = vmatprep.subr.mxu0 0.0
    %312 = vmatpush1.msra.mxu0 0.0
    %313 = vmatprep.subr.mxu0 0.0
    %314 = vmatpush1.msra.mxu0 0.0
    %315 = vmatprep.subr.mxu0 0.0
    %316 = vmatpush1.msra.mxu0 0.0
    %317 = vmatprep.subr.mxu0 0.0
    %318 = vmatpush1.msra.mxu0 0.0
    %319 = vmatprep.subr.mxu0 0.0
    %320 = vmatpush1.msra.mxu0 0.0
    %321 = vmatprep.subr.mxu0 0.0
    %322 = vmatpush1.msra.mxu0 0.0
    %323 = vmatprep.subr.mxu0 0.0
    %324 = vmatpush1.msra.mxu0 0.0
    %325 = vmatprep.mubr.f32.mxu0 0.0
    %326 = vmatmul.mubr.f32.gmra.mrb[0].mxu0 %v222
    %v327 = vpop.f32.mrb[0].mxu0
    %v328 = vadd.f32 %v259, %v327
    %v329 = vpop.f32.mrb[0].mxu0
    %330 = vmatprep.mubr.f32.mxu0 0.0
    %331 = vmatmul.mubr.f32.gmra.mrb[0].mxu0 %v223
    %v332 = vpop.f32.mrb[0].mxu0
    %v333 = vadd.f32 %v259, %v332
    %v334 = vpop.f32.mrb[0].mxu0
    %335 = vmatprep.mubr.f32.mxu0 0.0
    %336 = vmatmul.mubr.f32.gmra.mrb[0].mxu0 %v224
    %v337 = vpop.f32.mrb[0].mxu0
    %v338 = vadd.f32 %v259, %v337
    %v339 = vpop.f32.mrb[0].mxu0
    %340 = vmatprep.mubr.f32.mxu0 0.0
    %341 = vmatmul.mubr.f32.gmra.mrb[0].mxu0 %v225
    %v342 = vpop.f32.mrb[0].mxu0
    %v343 = vadd.f32 %v259, %v342
    %v344 = vpop.f32.mrb[0].mxu0
    %345 = vmatprep.mubr.f32.mxu0 0.0
    %346 = vmatmul.mubr.f32.gmra.mrb[0].mxu0 %v226
    %v347 = vpop.f32.mrb[0].mxu0
    %v348 = vadd.f32 %v259, %v347
    %v349 = vpop.f32.mrb[0].mxu0
    %350 = vmatprep.mubr.f32.mxu0 0.0
    %351 = vmatmul.mubr.f32.gmra.mrb[0].mxu0 %v227
    %v352 = vpop.f32.mrb[0].mxu0
    %v353 = vadd.f32 %v259, %v352
    %v354 = vpop.f32.mrb[0].mxu0
    %355 = vmatprep.mubr.f32.mxu0 0.0
    %356 = vmatmul.mubr.f32.gmra.mrb[0].mxu0 %v228
    %v357 = vpop.f32.mrb[0].mxu0
    %v358 = vadd.f32 %v259, %v357
    %v359 = vpop.f32.mrb[0].mxu0
    %360 = vmatprep.mubr.f32.mxu0 0.0
    %361 = vmatmul.mubr.f32.gmra.mrb[0].mxu0 %v229
    %v362 = vpop.f32.mrb[0].mxu0
    %v363 = vadd.f32 %v259, %v362
    %v364 = vpop.f32.mrb[0].mxu0
    %365 = vmatprep.mubr.f32.mxu0 0.0
    %366 = vmatmul.mubr.f32.gmra.mrb[0].mxu0 %v230
    %v367 = vpop.f32.mrb[0].mxu0
    %v368 = vadd.f32 %v259, %v367
    %v369 = vpop.f32.mrb[0].mxu0
    %370 = vmatprep.mubr.f32.mxu0 0.0
    %371 = vmatmul.mubr.f32.gmra.mrb[0].mxu0 %v231
    %v372 = vpop.f32.mrb[0].mxu0
    %v373 = vadd.f32 %v259, %v372
    %v374 = vpop.f32.mrb[0].mxu0
    %375 = vmatprep.mubr.f32.mxu0 0.0
    %376 = vmatmul.mubr.f32.gmra.mrb[0].mxu0 %v232
    %v377 = vpop.f32.mrb[0].mxu0
    %v378 = vadd.f32 %v259, %v377
    %v379 = vpop.f32.mrb[0].mxu0
    %380 = vmatprep.mubr.f32.mxu0 0.0
    %381 = vmatmul.mubr.f32.gmra.mrb[0].mxu0 %v233
    %v382 = vpop.f32.mrb[0].mxu0
    %v383 = vadd.f32 %v259, %v382
    %v384 = vpop.f32.mrb[0].mxu0
    %385 = vmatprep.mubr.f32.mxu0 0.0
    %386 = vmatmul.mubr.f32.gmra.mrb[0].mxu0 %v234
    %v387 = vpop.f32.mrb[0].mxu0
    %v388 = vadd.f32 %v259, %v387
    %v389 = vpop.f32.mrb[0].mxu0
    %390 = vmatprep.mubr.f32.mxu0 0.0
    %391 = vmatmul.mubr.f32.gmra.mrb[0].mxu0 %v235
    %v392 = vpop.f32.mrb[0].mxu0
    %v393 = vadd.f32 %v259, %v392
    %v394 = vpop.f32.mrb[0].mxu0
    %395 = vmatprep.mubr.f32.mxu0 0.0
    %396 = vmatmul.mubr.f32.gmra.mrb[0].mxu0 %v236
    %v397 = vpop.f32.mrb[0].mxu0
    %v398 = vadd.f32 %v259, %v397
    %v399 = vpop.f32.mrb[0].mxu0
    %400 = vmatprep.mubr.f32.mxu0 0.0
    %401 = vmatmul.mubr.f32.gmra.mrb[0].mxu0 %v237
    %v402 = vpop.f32.mrb[0].mxu0
    %v403 = vadd.f32 %v259, %v402
    %v404 = vpop.f32.mrb[0].mxu0
    %405 = vdwg.mxu0
    %v406 = vmax.f32 %v328, 0.0
    %v407 = vmax.f32 %v333, 0.0
    %v408 = vmax.f32 %v338, 0.0
    %v409 = vmax.f32 %v343, 0.0
    %v410 = vmax.f32 %v348, 0.0
    %v411 = vmax.f32 %v353, 0.0
    %v412 = vmax.f32 %v358, 0.0
    %v413 = vmax.f32 %v363, 0.0
    %v414 = vmax.f32 %v368, 0.0
    %v415 = vmax.f32 %v373, 0.0
    %v416 = vmax.f32 %v378, 0.0
    %v417 = vmax.f32 %v383, 0.0
    %v418 = vmax.f32 %v388, 0.0
    %v419 = vmax.f32 %v393, 0.0
    %v420 = vmax.f32 %v398, 0.0
    %v421 = vmax.f32 %v403, 0.0
    %v422 = vld [vmem:[#allocation2] sm:$0xf]
    %v423 = vld [vmem:[#allocation2 + $0x4] sm:$0xf]
    %v424 = vld [vmem:[#allocation2 + $0x8] sm:$0xf]
    %v425 = vld [vmem:[#allocation2 + $0xc] sm:$0xf]
    %v426 = vld [vmem:[#allocation2 + $0x10] sm:$0xf]
    %v427 = vld [vmem:[#allocation2 + $0x14] sm:$0xf]
    %v428 = vld [vmem:[#allocation2 + $0x18] sm:$0xf]
    %v429 = vld [vmem:[#allocation2 + $0x1c] sm:$0xf]
    %v430 = vld [vmem:[#allocation2 + $0x20] sm:$0xf]
    %v431 = vld [vmem:[#allocation2 + $0x24] sm:$0xf]
    %v432 = vld [vmem:[#allocation2 + $0x28] sm:$0xf]
    %v433 = vld [vmem:[#allocation2 + $0x2c] sm:$0xf]
    %v434 = vld [vmem:[#allocation2 + $0x30] sm:$0xf]
    %v435 = vld [vmem:[#allocation2 + $0x34] sm:$0xf]
    %v436 = vld [vmem:[#allocation2 + $0x38] sm:$0xf]
    %v437 = vld [vmem:[#allocation2 + $0x3c] sm:$0xf]
    %v438 = vpack.c.bf16 %v407, %v406
    %v439 = vpack.c.bf16 %v409, %v408
    %v440 = vpack.c.bf16 %v411, %v410
    %v441 = vpack.c.bf16 %v413, %v412
    %v442 = vpack.c.bf16 %v415, %v414
    %v443 = vpack.c.bf16 %v417, %v416
    %v444 = vpack.c.bf16 %v419, %v418
    %v445 = vpack.c.bf16 %v421, %v420
    %v462 = vunpack.c.l.b16 %v422
    %v463 = vunpack.c.l.b16 %v423
    %v464 = vunpack.c.l.b16 %v424
    %v465 = vunpack.c.l.b16 %v425
    %v466 = vunpack.c.l.b16 %v426
    %v467 = vunpack.c.l.b16 %v427
    %v468 = vunpack.c.l.b16 %v428
    %v469 = vunpack.c.l.b16 %v429
    %v470 = vunpack.c.l.b16 %v430
    %v471 = vunpack.c.l.b16 %v431
    %v472 = vunpack.c.l.b16 %v432
    %v473 = vunpack.c.l.b16 %v433
    %v474 = vunpack.c.l.b16 %v434
    %v475 = vunpack.c.l.b16 %v435
    %v476 = vunpack.c.l.b16 %v436
    %v477 = vunpack.c.l.b16 %v437
    %v478 = vpack.c.b16 %v463, %v462
    %v479 = vpack.c.b16 %v465, %v464
    %v480 = vpack.c.b16 %v467, %v466
    %v481 = vpack.c.b16 %v469, %v468
    %v482 = vpack.c.b16 %v471, %v470
    %v483 = vpack.c.b16 %v473, %v472
    %v484 = vpack.c.b16 %v475, %v474
    %v485 = vpack.c.b16 %v477, %v476
    %494 = vmatprep.subr.bf16.mxu0 0
    %495 = vmatpush1.bf16.msra.mxu0 %v438
    %496 = vmatprep.subr.bf16.mxu0 0
    %497 = vmatpush1.bf16.msra.mxu0 %v439
    %498 = vmatprep.subr.bf16.mxu0 0
    %499 = vmatpush1.bf16.msra.mxu0 %v440
    %500 = vmatprep.subr.bf16.mxu0 0
    %501 = vmatpush1.bf16.msra.mxu0 %v441
    %502 = vmatprep.subr.bf16.mxu0 0
    %503 = vmatpush1.bf16.msra.mxu0 %v442
    %504 = vmatprep.subr.bf16.mxu0 0
    %505 = vmatpush1.bf16.msra.mxu0 %v443
    %506 = vmatprep.subr.bf16.mxu0 0
    %507 = vmatpush1.bf16.msra.mxu0 %v444
    %508 = vmatprep.subr.bf16.mxu0 0
    %509 = vmatpush1.bf16.msra.mxu0 %v445
    %510 = vmatprep.subr.bf16.mxu0 0
    %511 = vmatpush1.bf16.msra.mxu0 0
    %512 = vmatprep.subr.bf16.mxu0 0
    %513 = vmatpush1.bf16.msra.mxu0 0
    %514 = vmatprep.subr.bf16.mxu0 0
    %515 = vmatpush1.bf16.msra.mxu0 0
    %516 = vmatprep.subr.bf16.mxu0 0
    %517 = vmatpush1.bf16.msra.mxu0 0
    %518 = vmatprep.subr.bf16.mxu0 0
    %519 = vmatpush1.bf16.msra.mxu0 0
    %520 = vmatprep.subr.bf16.mxu0 0
    %521 = vmatpush1.bf16.msra.mxu0 0
    %522 = vmatprep.subr.bf16.mxu0 0
    %523 = vmatpush1.bf16.msra.mxu0 0
    %524 = vmatprep.subr.bf16.mxu0 0
    %525 = vmatpush1.bf16.msra.mxu0 0
    %526 = vmatprep.mubr.bf16.mxu0 0
    %527 = vmatmul.mubr.bf16.gmra.mrb[0].mxu0 %v478
    %v528 = vpop.f32.mrb[0].mxu0
    %v529 = vadd.f32 0.0, %v528
    %v530 = vpop.f32.mrb[0].mxu0
    %v531 = vpop.f32.mrb[0].mxu0
    %v532 = vadd.f32 0.0, %v531
    %v533 = vpop.f32.mrb[0].mxu0
    %534 = vmatprep.mubr.bf16.mxu0 0
    %535 = vmatmul.mubr.bf16.gmra.mrb[0].mxu0 %v479
    %v536 = vpop.f32.mrb[0].mxu0
    %v537 = vadd.f32 0.0, %v536
    %v538 = vpop.f32.mrb[0].mxu0
    %v539 = vpop.f32.mrb[0].mxu0
    %v540 = vadd.f32 0.0, %v539
    %v541 = vpop.f32.mrb[0].mxu0
    %542 = vmatprep.mubr.bf16.mxu0 0
    %543 = vmatmul.mubr.bf16.gmra.mrb[0].mxu0 %v480
    %v544 = vpop.f32.mrb[0].mxu0
    %v545 = vadd.f32 0.0, %v544
    %v546 = vpop.f32.mrb[0].mxu0
    %v547 = vpop.f32.mrb[0].mxu0
    %v548 = vadd.f32 0.0, %v547
    %v549 = vpop.f32.mrb[0].mxu0
    %550 = vmatprep.mubr.bf16.mxu0 0
    %551 = vmatmul.mubr.bf16.gmra.mrb[0].mxu0 %v481
    %v552 = vpop.f32.mrb[0].mxu0
    %v553 = vadd.f32 0.0, %v552
    %v554 = vpop.f32.mrb[0].mxu0
    %v555 = vpop.f32.mrb[0].mxu0
    %v556 = vadd.f32 0.0, %v555
    %v557 = vpop.f32.mrb[0].mxu0
    %558 = vmatprep.mubr.bf16.mxu0 0
    %559 = vmatmul.mubr.bf16.gmra.mrb[0].mxu0 %v482
    %v560 = vpop.f32.mrb[0].mxu0
    %v561 = vadd.f32 0.0, %v560
    %v562 = vpop.f32.mrb[0].mxu0
    %v563 = vpop.f32.mrb[0].mxu0
    %v564 = vadd.f32 0.0, %v563
    %v565 = vpop.f32.mrb[0].mxu0
    %566 = vmatprep.mubr.bf16.mxu0 0
    %567 = vmatmul.mubr.bf16.gmra.mrb[0].mxu0 %v483
    %v568 = vpop.f32.mrb[0].mxu0
    %v569 = vadd.f32 0.0, %v568
    %v570 = vpop.f32.mrb[0].mxu0
    %v571 = vpop.f32.mrb[0].mxu0
    %v572 = vadd.f32 0.0, %v571
    %v573 = vpop.f32.mrb[0].mxu0
    %574 = vmatprep.mubr.bf16.mxu0 0
    %575 = vmatmul.mubr.bf16.gmra.mrb[0].mxu0 %v484
    %v576 = vpop.f32.mrb[0].mxu0
    %v577 = vadd.f32 0.0, %v576
    %v578 = vpop.f32.mrb[0].mxu0
    %v579 = vpop.f32.mrb[0].mxu0
    %v580 = vadd.f32 0.0, %v579
    %v581 = vpop.f32.mrb[0].mxu0
    %582 = vmatprep.mubr.bf16.mxu0 0
    %583 = vmatmul.mubr.bf16.gmra.mrb[0].mxu0 %v485
    %v584 = vpop.f32.mrb[0].mxu0
    %v585 = vadd.f32 0.0, %v584
    %v586 = vpop.f32.mrb[0].mxu0
    %v587 = vpop.f32.mrb[0].mxu0
    %v588 = vadd.f32 0.0, %v587
    %v589 = vpop.f32.mrb[0].mxu0
    %590 = vdwg.mxu0
    %v591 = vpack.c.bf16 %v532, %v529
    %v592 = vpack.c.bf16 %v540, %v537
    %v593 = vpack.c.bf16 %v548, %v545
    %v594 = vpack.c.bf16 %v556, %v553
    %v595 = vpack.c.bf16 %v564, %v561
    %v596 = vpack.c.bf16 %v572, %v569
    %v597 = vpack.c.bf16 %v580, %v577
    %v598 = vpack.c.bf16 %v588, %v585
    %599 = vmatprep.subr.bf16.mxu0 0
    %600 = vmatpush1.bf16.msra.mxu0 %v591
    %601 = vmatprep.subr.bf16.mxu0 0
    %602 = vmatpush1.bf16.msra.mxu0 %v592
    %603 = vmatprep.subr.bf16.mxu0 0
    %604 = vmatpush1.bf16.msra.mxu0 %v593
    %605 = vmatprep.subr.bf16.mxu0 0
    %606 = vmatpush1.bf16.msra.mxu0 %v594
    %607 = vmatprep.subr.bf16.mxu0 0
    %608 = vmatpush1.bf16.msra.mxu0 %v595
    %609 = vmatprep.subr.bf16.mxu0 0
    %610 = vmatpush1.bf16.msra.mxu0 %v596
    %611 = vmatprep.subr.bf16.mxu0 0
    %612 = vmatpush1.bf16.msra.mxu0 %v597
    %613 = vmatprep.subr.bf16.mxu0 0
    %614 = vmatpush1.bf16.msra.mxu0 %v598
    %615 = vmatprep.subr.bf16.mxu0 0
    %616 = vmatpush1.bf16.msra.mxu0 0
    %617 = vmatprep.subr.bf16.mxu0 0
    %618 = vmatpush1.bf16.msra.mxu0 0
    %619 = vmatprep.subr.bf16.mxu0 0
    %620 = vmatpush1.bf16.msra.mxu0 0
    %621 = vmatprep.subr.bf16.mxu0 0
    %622 = vmatpush1.bf16.msra.mxu0 0
    %623 = vmatprep.subr.bf16.mxu0 0
    %624 = vmatpush1.bf16.msra.mxu0 0
    %625 = vmatprep.subr.bf16.mxu0 0
    %626 = vmatpush1.bf16.msra.mxu0 0
    %627 = vmatprep.subr.bf16.mxu0 0
    %628 = vmatpush1.bf16.msra.mxu0 0
    %629 = vmatprep.subr.bf16.mxu0 0
    %630 = vmatpush1.bf16.msra.mxu0 0
    %631 = vmatprep.mubr.bf16.mxu0 0
    %632 = vmatmul.mubr.bf16.gmra.mrb[0].mxu0 %v478
    %v633 = vpop.f32.mrb[0].mxu0
    %v634 = vadd.f32 0.0, %v633
    %v635 = vpop.f32.mrb[0].mxu0
    %v636 = vpop.f32.mrb[0].mxu0
    %v637 = vadd.f32 0.0, %v636
    %v638 = vpop.f32.mrb[0].mxu0
    %639 = vmatprep.mubr.bf16.mxu0 0
    %640 = vmatmul.mubr.bf16.gmra.mrb[0].mxu0 %v479
    %v641 = vpop.f32.mrb[0].mxu0
    %v642 = vadd.f32 0.0, %v641
    %v643 = vpop.f32.mrb[0].mxu0
    %v644 = vpop.f32.mrb[0].mxu0
    %v645 = vadd.f32 0.0, %v644
    %v646 = vpop.f32.mrb[0].mxu0
    %647 = vmatprep.mubr.bf16.mxu0 0
    %648 = vmatmul.mubr.bf16.gmra.mrb[0].mxu0 %v480
    %v649 = vpop.f32.mrb[0].mxu0
    %v650 = vadd.f32 0.0, %v649
    %v651 = vpop.f32.mrb[0].mxu0
    %v652 = vpop.f32.mrb[0].mxu0
    %v653 = vadd.f32 0.0, %v652
    %v654 = vpop.f32.mrb[0].mxu0
    %655 = vmatprep.mubr.bf16.mxu0 0
    %656 = vmatmul.mubr.bf16.gmra.mrb[0].mxu0 %v481
    %v657 = vpop.f32.mrb[0].mxu0
    %v658 = vadd.f32 0.0, %v657
    %v659 = vpop.f32.mrb[0].mxu0
    %v660 = vpop.f32.mrb[0].mxu0
    %v661 = vadd.f32 0.0, %v660
    %v662 = vpop.f32.mrb[0].mxu0
    %663 = vmatprep.mubr.bf16.mxu0 0
    %664 = vmatmul.mubr.bf16.gmra.mrb[0].mxu0 %v482
    %v665 = vpop.f32.mrb[0].mxu0
    %v666 = vadd.f32 0.0, %v665
    %v667 = vpop.f32.mrb[0].mxu0
    %v668 = vpop.f32.mrb[0].mxu0
    %v669 = vadd.f32 0.0, %v668
    %v670 = vpop.f32.mrb[0].mxu0
    %671 = vmatprep.mubr.bf16.mxu0 0
    %672 = vmatmul.mubr.bf16.gmra.mrb[0].mxu0 %v483
    %v673 = vpop.f32.mrb[0].mxu0
    %v674 = vadd.f32 0.0, %v673
    %v675 = vpop.f32.mrb[0].mxu0
    %v676 = vpop.f32.mrb[0].mxu0
    %v677 = vadd.f32 0.0, %v676
    %v678 = vpop.f32.mrb[0].mxu0
    %679 = vmatprep.mubr.bf16.mxu0 0
    %680 = vmatmul.mubr.bf16.gmra.mrb[0].mxu0 %v484
    %v681 = vpop.f32.mrb[0].mxu0
    %v682 = vadd.f32 0.0, %v681
    %v683 = vpop.f32.mrb[0].mxu0
    %v684 = vpop.f32.mrb[0].mxu0
    %v685 = vadd.f32 0.0, %v684
    %v686 = vpop.f32.mrb[0].mxu0
    %687 = vmatprep.mubr.bf16.mxu0 0
    %688 = vmatmul.mubr.bf16.gmra.mrb[0].mxu0 %v485
    %v689 = vpop.f32.mrb[0].mxu0
    %v690 = vadd.f32 0.0, %v689
    %v691 = vpop.f32.mrb[0].mxu0
    %v692 = vpop.f32.mrb[0].mxu0
    %v693 = vadd.f32 0.0, %v692
    %v694 = vpop.f32.mrb[0].mxu0
    %695 = vdwg.mxu0
    %v696 = vpack.c.bf16 %v637, %v634
    %v697 = vpack.c.bf16 %v645, %v642
    %v698 = vpack.c.bf16 %v653, %v650
    %v699 = vpack.c.bf16 %v661, %v658
    %v700 = vpack.c.bf16 %v669, %v666
    %v701 = vpack.c.bf16 %v677, %v674
    %v702 = vpack.c.bf16 %v685, %v682
    %v703 = vpack.c.bf16 %v693, %v690
    %704 = vmatprep.subr.bf16.mxu0 0
    %705 = vmatpush1.bf16.msra.mxu0 %v696
    %706 = vmatprep.subr.bf16.mxu0 0
    %707 = vmatpush1.bf16.msra.mxu0 %v697
    %708 = vmatprep.subr.bf16.mxu0 0
    %709 = vmatpush1.bf16.msra.mxu0 %v698
    %710 = vmatprep.subr.bf16.mxu0 0
    %711 = vmatpush1.bf16.msra.mxu0 %v699
    %712 = vmatprep.subr.bf16.mxu0 0
    %713 = vmatpush1.bf16.msra.mxu0 %v700
    %714 = vmatprep.subr.bf16.mxu0 0
    %715 = vmatpush1.bf16.msra.mxu0 %v701
    %716 = vmatprep.subr.bf16.mxu0 0
    %717 = vmatpush1.bf16.msra.mxu0 %v702
    %718 = vmatprep.subr.bf16.mxu0 0
    %719 = vmatpush1.bf16.msra.mxu0 %v703
    %720 = vmatprep.subr.bf16.mxu0 0
    %721 = vmatpush1.bf16.msra.mxu0 0
    %722 = vmatprep.subr.bf16.mxu0 0
    %723 = vmatpush1.bf16.msra.mxu0 0
    %724 = vmatprep.subr.bf16.mxu0 0
    %725 = vmatpush1.bf16.msra.mxu0 0
    %726 = vmatprep.subr.bf16.mxu0 0
    %727 = vmatpush1.bf16.msra.mxu0 0
    %728 = vmatprep.subr.bf16.mxu0 0
    %729 = vmatpush1.bf16.msra.mxu0 0
    %730 = vmatprep.subr.bf16.mxu0 0
    %731 = vmatpush1.bf16.msra.mxu0 0
    %732 = vmatprep.subr.bf16.mxu0 0
    %733 = vmatpush1.bf16.msra.mxu0 0
    %734 = vmatprep.subr.bf16.mxu0 0
    %735 = vmatpush1.bf16.msra.mxu0 0
    %736 = vmatprep.mubr.bf16.mxu0 0
    %737 = vmatmul.mubr.bf16.gmra.mrb[0].mxu0 %v478
    %v738 = vpop.f32.mrb[0].mxu0
    %v739 = vadd.f32 0.0, %v738
    %v740 = vpop.f32.mrb[0].mxu0
    %v741 = vpop.f32.mrb[0].mxu0
    %v742 = vadd.f32 0.0, %v741
    %v743 = vpop.f32.mrb[0].mxu0
    %744 = vmatprep.mubr.bf16.mxu0 0
    %745 = vmatmul.mubr.bf16.gmra.mrb[0].mxu0 %v479
    %v746 = vpop.f32.mrb[0].mxu0
    %v747 = vadd.f32 0.0, %v746
    %v748 = vpop.f32.mrb[0].mxu0
    %v749 = vpop.f32.mrb[0].mxu0
    %v750 = vadd.f32 0.0, %v749
    %v751 = vpop.f32.mrb[0].mxu0
    %752 = vmatprep.mubr.bf16.mxu0 0
    %753 = vmatmul.mubr.bf16.gmra.mrb[0].mxu0 %v480
    %v754 = vpop.f32.mrb[0].mxu0
    %v755 = vadd.f32 0.0, %v754
    %v756 = vpop.f32.mrb[0].mxu0
    %v757 = vpop.f32.mrb[0].mxu0
    %v758 = vadd.f32 0.0, %v757
    %v759 = vpop.f32.mrb[0].mxu0
    %760 = vmatprep.mubr.bf16.mxu0 0
    %761 = vmatmul.mubr.bf16.gmra.mrb[0].mxu0 %v481
    %v762 = vpop.f32.mrb[0].mxu0
    %v763 = vadd.f32 0.0, %v762
    %v764 = vpop.f32.mrb[0].mxu0
    %v765 = vpop.f32.mrb[0].mxu0
    %v766 = vadd.f32 0.0, %v765
    %v767 = vpop.f32.mrb[0].mxu0
    %768 = vmatprep.mubr.bf16.mxu0 0
    %769 = vmatmul.mubr.bf16.gmra.mrb[0].mxu0 %v482
    %v770 = vpop.f32.mrb[0].mxu0
    %v771 = vadd.f32 0.0, %v770
    %v772 = vpop.f32.mrb[0].mxu0
    %v773 = vpop.f32.mrb[0].mxu0
    %v774 = vadd.f32 0.0, %v773
    %v775 = vpop.f32.mrb[0].mxu0
    %776 = vmatprep.mubr.bf16.mxu0 0
    %777 = vmatmul.mubr.bf16.gmra.mrb[0].mxu0 %v483
    %v778 = vpop.f32.mrb[0].mxu0
    %v779 = vadd.f32 0.0, %v778
    %v780 = vpop.f32.mrb[0].mxu0
    %v781 = vpop.f32.mrb[0].mxu0
    %v782 = vadd.f32 0.0, %v781
    %v783 = vpop.f32.mrb[0].mxu0
    %784 = vmatprep.mubr.bf16.mxu0 0
    %785 = vmatmul.mubr.bf16.gmra.mrb[0].mxu0 %v484
    %v786 = vpop.f32.mrb[0].mxu0
    %v787 = vadd.f32 0.0, %v786
    %v788 = vpop.f32.mrb[0].mxu0
    %v789 = vpop.f32.mrb[0].mxu0
    %v790 = vadd.f32 0.0, %v789
    %v791 = vpop.f32.mrb[0].mxu0
    %792 = vmatprep.mubr.bf16.mxu0 0
    %793 = vmatmul.mubr.bf16.gmra.mrb[0].mxu0 %v485
    %v794 = vpop.f32.mrb[0].mxu0
    %v795 = vadd.f32 0.0, %v794
    %v796 = vpop.f32.mrb[0].mxu0
    %v797 = vpop.f32.mrb[0].mxu0
    %v798 = vadd.f32 0.0, %v797
    %v799 = vpop.f32.mrb[0].mxu0
    %800 = vdwg.mxu0
    %v801 = vpack.c.bf16 %v742, %v739
    %v802 = vpack.c.bf16 %v750, %v747
    %v803 = vpack.c.bf16 %v758, %v755
    %v804 = vpack.c.bf16 %v766, %v763
    %v805 = vpack.c.bf16 %v774, %v771
    %v806 = vpack.c.bf16 %v782, %v779
    %v807 = vpack.c.bf16 %v790, %v787
    %v808 = vpack.c.bf16 %v798, %v795
    %809 = vmatprep.subr.bf16.mxu0 0
    %810 = vmatpush1.bf16.msra.mxu0 %v801
    %811 = vmatprep.subr.bf16.mxu0 0
    %812 = vmatpush1.bf16.msra.mxu0 %v802
    %813 = vmatprep.subr.bf16.mxu0 0
    %814 = vmatpush1.bf16.msra.mxu0 %v803
    %815 = vmatprep.subr.bf16.mxu0 0
    %816 = vmatpush1.bf16.msra.mxu0 %v804
    %817 = vmatprep.subr.bf16.mxu0 0
    %818 = vmatpush1.bf16.msra.mxu0 %v805
    %819 = vmatprep.subr.bf16.mxu0 0
    %820 = vmatpush1.bf16.msra.mxu0 %v806
    %821 = vmatprep.subr.bf16.mxu0 0
    %822 = vmatpush1.bf16.msra.mxu0 %v807
    %823 = vmatprep.subr.bf16.mxu0 0
    %824 = vmatpush1.bf16.msra.mxu0 %v808
    %825 = vmatprep.subr.bf16.mxu0 0
    %826 = vmatpush1.bf16.msra.mxu0 0
    %827 = vmatprep.subr.bf16.mxu0 0
    %828 = vmatpush1.bf16.msra.mxu0 0
    %829 = vmatprep.subr.bf16.mxu0 0
    %830 = vmatpush1.bf16.msra.mxu0 0
    %831 = vmatprep.subr.bf16.mxu0 0
    %832 = vmatpush1.bf16.msra.mxu0 0
    %833 = vmatprep.subr.bf16.mxu0 0
    %834 = vmatpush1.bf16.msra.mxu0 0
    %835 = vmatprep.subr.bf16.mxu0 0
    %836 = vmatpush1.bf16.msra.mxu0 0
    %837 = vmatprep.subr.bf16.mxu0 0
    %838 = vmatpush1.bf16.msra.mxu0 0
    %839 = vmatprep.subr.bf16.mxu0 0
    %840 = vmatpush1.bf16.msra.mxu0 0
    %841 = vmatprep.mubr.bf16.mxu0 0
    %842 = vmatmul.mubr.bf16.gmra.mrb[0].mxu0 %v478
    %v843 = vpop.f32.mrb[0].mxu0
    %v844 = vadd.f32 0.0, %v843
    %v845 = vpop.f32.mrb[0].mxu0
    %v846 = vpop.f32.mrb[0].mxu0
    %v847 = vadd.f32 0.0, %v846
    %v848 = vpop.f32.mrb[0].mxu0
    %849 = vmatprep.mubr.bf16.mxu0 0
    %850 = vmatmul.mubr.bf16.gmra.mrb[0].mxu0 %v479
    %v851 = vpop.f32.mrb[0].mxu0
    %v852 = vadd.f32 0.0, %v851
    %v853 = vpop.f32.mrb[0].mxu0
    %v854 = vpop.f32.mrb[0].mxu0
    %v855 = vadd.f32 0.0, %v854
    %v856 = vpop.f32.mrb[0].mxu0
    %857 = vmatprep.mubr.bf16.mxu0 0
    %858 = vmatmul.mubr.bf16.gmra.mrb[0].mxu0 %v480
    %v859 = vpop.f32.mrb[0].mxu0
    %v860 = vadd.f32 0.0, %v859
    %v861 = vpop.f32.mrb[0].mxu0
    %v862 = vpop.f32.mrb[0].mxu0
    %v863 = vadd.f32 0.0, %v862
    %v864 = vpop.f32.mrb[0].mxu0
    %865 = vmatprep.mubr.bf16.mxu0 0
    %866 = vmatmul.mubr.bf16.gmra.mrb[0].mxu0 %v481
    %v867 = vpop.f32.mrb[0].mxu0
    %v868 = vadd.f32 0.0, %v867
    %v869 = vpop.f32.mrb[0].mxu0
    %v870 = vpop.f32.mrb[0].mxu0
    %v871 = vadd.f32 0.0, %v870
    %v872 = vpop.f32.mrb[0].mxu0
    %873 = vmatprep.mubr.bf16.mxu0 0
    %874 = vmatmul.mubr.bf16.gmra.mrb[0].mxu0 %v482
    %v875 = vpop.f32.mrb[0].mxu0
    %v876 = vadd.f32 0.0, %v875
    %v877 = vpop.f32.mrb[0].mxu0
    %v878 = vpop.f32.mrb[0].mxu0
    %v879 = vadd.f32 0.0, %v878
    %v880 = vpop.f32.mrb[0].mxu0
    %881 = vmatprep.mubr.bf16.mxu0 0
    %882 = vmatmul.mubr.bf16.gmra.mrb[0].mxu0 %v483
    %v883 = vpop.f32.mrb[0].mxu0
    %v884 = vadd.f32 0.0, %v883
    %v885 = vpop.f32.mrb[0].mxu0
    %v886 = vpop.f32.mrb[0].mxu0
    %v887 = vadd.f32 0.0, %v886
    %v888 = vpop.f32.mrb[0].mxu0
    %889 = vmatprep.mubr.bf16.mxu0 0
    %890 = vmatmul.mubr.bf16.gmra.mrb[0].mxu0 %v484
    %v891 = vpop.f32.mrb[0].mxu0
    %v892 = vadd.f32 0.0, %v891
    %v893 = vpop.f32.mrb[0].mxu0
    %v894 = vpop.f32.mrb[0].mxu0
    %v895 = vadd.f32 0.0, %v894
    %v896 = vpop.f32.mrb[0].mxu0
    %897 = vmatprep.mubr.bf16.mxu0 0
    %898 = vmatmul.mubr.bf16.gmra.mrb[0].mxu0 %v485
    %v899 = vpop.f32.mrb[0].mxu0
    %v900 = vadd.f32 0.0, %v899
    %v901 = vpop.f32.mrb[0].mxu0
    %v902 = vpop.f32.mrb[0].mxu0
    %v903 = vadd.f32 0.0, %v902
    %v904 = vpop.f32.mrb[0].mxu0
    %905 = vdwg.mxu0
    %v906 = vpack.c.bf16 %v847, %v844
    %v907 = vpack.c.bf16 %v855, %v852
    %v908 = vpack.c.bf16 %v863, %v860
    %v909 = vpack.c.bf16 %v871, %v868
    %v910 = vpack.c.bf16 %v879, %v876
    %v911 = vpack.c.bf16 %v887, %v884
    %v912 = vpack.c.bf16 %v895, %v892
    %v913 = vpack.c.bf16 %v903, %v900
    %914 = vmatprep.subr.bf16.mxu0 0
    %915 = vmatpush1.bf16.msra.mxu0 %v906
    %916 = vmatprep.subr.bf16.mxu0 0
    %917 = vmatpush1.bf16.msra.mxu0 %v907
    %918 = vmatprep.subr.bf16.mxu0 0
    %919 = vmatpush1.bf16.msra.mxu0 %v908
    %920 = vmatprep.subr.bf16.mxu0 0
    %921 = vmatpush1.bf16.msra.mxu0 %v909
    %922 = vmatprep.subr.bf16.mxu0 0
    %923 = vmatpush1.bf16.msra.mxu0 %v910
    %924 = vmatprep.subr.bf16.mxu0 0
    %925 = vmatpush1.bf16.msra.mxu0 %v911
    %926 = vmatprep.subr.bf16.mxu0 0
    %927 = vmatpush1.bf16.msra.mxu0 %v912
    %928 = vmatprep.subr.bf16.mxu0 0
    %929 = vmatpush1.bf16.msra.mxu0 %v913
    %930 = vmatprep.subr.bf16.mxu0 0
    %931 = vmatpush1.bf16.msra.mxu0 0
    %932 = vmatprep.subr.bf16.mxu0 0
    %933 = vmatpush1.bf16.msra.mxu0 0
    %934 = vmatprep.subr.bf16.mxu0 0
    %935 = vmatpush1.bf16.msra.mxu0 0
    %936 = vmatprep.subr.bf16.mxu0 0
    %937 = vmatpush1.bf16.msra.mxu0 0
    %938 = vmatprep.subr.bf16.mxu0 0
    %939 = vmatpush1.bf16.msra.mxu0 0
    %940 = vmatprep.subr.bf16.mxu0 0
    %941 = vmatpush1.bf16.msra.mxu0 0
    %942 = vmatprep.subr.bf16.mxu0 0
    %943 = vmatpush1.bf16.msra.mxu0 0
    %944 = vmatprep.subr.bf16.mxu0 0
    %945 = vmatpush1.bf16.msra.mxu0 0
    %946 = vmatprep.mubr.bf16.mxu0 0
    %947 = vmatmul.mubr.bf16.gmra.mrb[0].mxu0 %v478
    %v948 = vpop.f32.mrb[0].mxu0
    %v949 = vadd.f32 0.0, %v948
    %v950 = vpop.f32.mrb[0].mxu0
    %v951 = vpop.f32.mrb[0].mxu0
    %v952 = vadd.f32 0.0, %v951
    %v953 = vpop.f32.mrb[0].mxu0
    %954 = vmatprep.mubr.bf16.mxu0 0
    %955 = vmatmul.mubr.bf16.gmra.mrb[0].mxu0 %v479
    %v956 = vpop.f32.mrb[0].mxu0
    %v957 = vadd.f32 0.0, %v956
    %v958 = vpop.f32.mrb[0].mxu0
    %v959 = vpop.f32.mrb[0].mxu0
    %v960 = vadd.f32 0.0, %v959
    %v961 = vpop.f32.mrb[0].mxu0
    %962 = vmatprep.mubr.bf16.mxu0 0
    %963 = vmatmul.mubr.bf16.gmra.mrb[0].mxu0 %v480
    %v964 = vpop.f32.mrb[0].mxu0
    %v965 = vadd.f32 0.0, %v964
    %v966 = vpop.f32.mrb[0].mxu0
    %v967 = vpop.f32.mrb[0].mxu0
    %v968 = vadd.f32 0.0, %v967
    %v969 = vpop.f32.mrb[0].mxu0
    %970 = vmatprep.mubr.bf16.mxu0 0
    %971 = vmatmul.mubr.bf16.gmra.mrb[0].mxu0 %v481
    %v972 = vpop.f32.mrb[0].mxu0
    %v973 = vadd.f32 0.0, %v972
    %v974 = vpop.f32.mrb[0].mxu0
    %v975 = vpop.f32.mrb[0].mxu0
    %v976 = vadd.f32 0.0, %v975
    %v977 = vpop.f32.mrb[0].mxu0
    %978 = vmatprep.mubr.bf16.mxu0 0
    %979 = vmatmul.mubr.bf16.gmra.mrb[0].mxu0 %v482
    %v980 = vpop.f32.mrb[0].mxu0
    %v981 = vadd.f32 0.0, %v980
    %v982 = vpop.f32.mrb[0].mxu0
    %v983 = vpop.f32.mrb[0].mxu0
    %v984 = vadd.f32 0.0, %v983
    %v985 = vpop.f32.mrb[0].mxu0
    %986 = vmatprep.mubr.bf16.mxu0 0
    %987 = vmatmul.mubr.bf16.gmra.mrb[0].mxu0 %v483
    %v988 = vpop.f32.mrb[0].mxu0
    %v989 = vadd.f32 0.0, %v988
    %v990 = vpop.f32.mrb[0].mxu0
    %v991 = vpop.f32.mrb[0].mxu0
    %v992 = vadd.f32 0.0, %v991
    %v993 = vpop.f32.mrb[0].mxu0
    %994 = vmatprep.mubr.bf16.mxu0 0
    %995 = vmatmul.mubr.bf16.gmra.mrb[0].mxu0 %v484
    %v996 = vpop.f32.mrb[0].mxu0
    %v997 = vadd.f32 0.0, %v996
    %v998 = vpop.f32.mrb[0].mxu0
    %v999 = vpop.f32.mrb[0].mxu0
    %v1000 = vadd.f32 0.0, %v999
    %v1001 = vpop.f32.mrb[0].mxu0
    %1002 = vmatprep.mubr.bf16.mxu0 0
    %1003 = vmatmul.mubr.bf16.gmra.mrb[0].mxu0 %v485
    %v1004 = vpop.f32.mrb[0].mxu0
    %v1005 = vadd.f32 0.0, %v1004
    %v1006 = vpop.f32.mrb[0].mxu0
    %v1007 = vpop.f32.mrb[0].mxu0
    %v1008 = vadd.f32 0.0, %v1007
    %v1009 = vpop.f32.mrb[0].mxu0
    %1010 = vdwg.mxu0
    %v1011 = vpack.c.bf16 %v952, %v949
    %v1012 = vpack.c.bf16 %v960, %v957
    %v1013 = vpack.c.bf16 %v968, %v965
    %v1014 = vpack.c.bf16 %v976, %v973
    %v1015 = vpack.c.bf16 %v984, %v981
    %v1016 = vpack.c.bf16 %v992, %v989
    %v1017 = vpack.c.bf16 %v1000, %v997
    %v1018 = vpack.c.bf16 %v1008, %v1005
    %1019 = vmatprep.subr.bf16.mxu0 0
    %1020 = vmatpush1.bf16.msra.mxu0 %v1011
    %1021 = vmatprep.subr.bf16.mxu0 0
    %1022 = vmatpush1.bf16.msra.mxu0 %v1012
    %1023 = vmatprep.subr.bf16.mxu0 0
    %1024 = vmatpush1.bf16.msra.mxu0 %v1013
    %1025 = vmatprep.subr.bf16.mxu0 0
    %1026 = vmatpush1.bf16.msra.mxu0 %v1014
    %1027 = vmatprep.subr.bf16.mxu0 0
    %1028 = vmatpush1.bf16.msra.mxu0 %v1015
    %1029 = vmatprep.subr.bf16.mxu0 0
    %1030 = vmatpush1.bf16.msra.mxu0 %v1016
    %1031 = vmatprep.subr.bf16.mxu0 0
    %1032 = vmatpush1.bf16.msra.mxu0 %v1017
    %1033 = vmatprep.subr.bf16.mxu0 0
    %1034 = vmatpush1.bf16.msra.mxu0 %v1018
    %1035 = vmatprep.subr.bf16.mxu0 0
    %1036 = vmatpush1.bf16.msra.mxu0 0
    %1037 = vmatprep.subr.bf16.mxu0 0
    %1038 = vmatpush1.bf16.msra.mxu0 0
    %1039 = vmatprep.subr.bf16.mxu0 0
    %1040 = vmatpush1.bf16.msra.mxu0 0
    %1041 = vmatprep.subr.bf16.mxu0 0
    %1042 = vmatpush1.bf16.msra.mxu0 0
    %1043 = vmatprep.subr.bf16.mxu0 0
    %1044 = vmatpush1.bf16.msra.mxu0 0
    %1045 = vmatprep.subr.bf16.mxu0 0
    %1046 = vmatpush1.bf16.msra.mxu0 0
    %1047 = vmatprep.subr.bf16.mxu0 0
    %1048 = vmatpush1.bf16.msra.mxu0 0
    %1049 = vmatprep.subr.bf16.mxu0 0
    %1050 = vmatpush1.bf16.msra.mxu0 0
    %1051 = vmatprep.mubr.bf16.mxu0 0
    %1052 = vmatmul.mubr.bf16.gmra.mrb[0].mxu0 %v478
    %v1053 = vpop.f32.mrb[0].mxu0
    %v1054 = vadd.f32 0.0, %v1053
    %v1055 = vpop.f32.mrb[0].mxu0
    %v1056 = vpop.f32.mrb[0].mxu0
    %v1057 = vadd.f32 0.0, %v1056
    %v1058 = vpop.f32.mrb[0].mxu0
    %1059 = vmatprep.mubr.bf16.mxu0 0
    %1060 = vmatmul.mubr.bf16.gmra.mrb[0].mxu0 %v479
    %v1061 = vpop.f32.mrb[0].mxu0
    %v1062 = vadd.f32 0.0, %v1061
    %v1063 = vpop.f32.mrb[0].mxu0
    %v1064 = vpop.f32.mrb[0].mxu0
    %v1065 = vadd.f32 0.0, %v1064
    %v1066 = vpop.f32.mrb[0].mxu0
    %1067 = vmatprep.mubr.bf16.mxu0 0
    %1068 = vmatmul.mubr.bf16.gmra.mrb[0].mxu0 %v480
    %v1069 = vpop.f32.mrb[0].mxu0
    %v1070 = vadd.f32 0.0, %v1069
    %v1071 = vpop.f32.mrb[0].mxu0
    %v1072 = vpop.f32.mrb[0].mxu0
    %v1073 = vadd.f32 0.0, %v1072
    %v1074 = vpop.f32.mrb[0].mxu0
    %1075 = vmatprep.mubr.bf16.mxu0 0
    %1076 = vmatmul.mubr.bf16.gmra.mrb[0].mxu0 %v481
    %v1077 = vpop.f32.mrb[0].mxu0
    %v1078 = vadd.f32 0.0, %v1077
    %v1079 = vpop.f32.mrb[0].mxu0
    %v1080 = vpop.f32.mrb[0].mxu0
    %v1081 = vadd.f32 0.0, %v1080
    %v1082 = vpop.f32.mrb[0].mxu0
    %1083 = vmatprep.mubr.bf16.mxu0 0
    %1084 = vmatmul.mubr.bf16.gmra.mrb[0].mxu0 %v482
    %v1085 = vpop.f32.mrb[0].mxu0
    %v1086 = vadd.f32 0.0, %v1085
    %v1087 = vpop.f32.mrb[0].mxu0
    %v1088 = vpop.f32.mrb[0].mxu0
    %v1089 = vadd.f32 0.0, %v1088
    %v1090 = vpop.f32.mrb[0].mxu0
    %1091 = vmatprep.mubr.bf16.mxu0 0
    %1092 = vmatmul.mubr.bf16.gmra.mrb[0].mxu0 %v483
    %v1093 = vpop.f32.mrb[0].mxu0
    %v1094 = vadd.f32 0.0, %v1093
    %v1095 = vpop.f32.mrb[0].mxu0
    %v1096 = vpop.f32.mrb[0].mxu0
    %v1097 = vadd.f32 0.0, %v1096
    %v1098 = vpop.f32.mrb[0].mxu0
    %1099 = vmatprep.mubr.bf16.mxu0 0
    %1100 = vmatmul.mubr.bf16.gmra.mrb[0].mxu0 %v484
    %v1101 = vpop.f32.mrb[0].mxu0
    %v1102 = vadd.f32 0.0, %v1101
    %v1103 = vpop.f32.mrb[0].mxu0
    %v1104 = vpop.f32.mrb[0].mxu0
    %v1105 = vadd.f32 0.0, %v1104
    %v1106 = vpop.f32.mrb[0].mxu0
    %1107 = vmatprep.mubr.bf16.mxu0 0
    %1108 = vmatmul.mubr.bf16.gmra.mrb[0].mxu0 %v485
    %v1109 = vpop.f32.mrb[0].mxu0
    %v1110 = vadd.f32 0.0, %v1109
    %v1111 = vpop.f32.mrb[0].mxu0
    %v1112 = vpop.f32.mrb[0].mxu0
    %v1113 = vadd.f32 0.0, %v1112
    %v1114 = vpop.f32.mrb[0].mxu0
    %1115 = vdwg.mxu0
    %v1116 = vpack.c.bf16 %v1057, %v1054
    %v1117 = vpack.c.bf16 %v1065, %v1062
    %v1118 = vpack.c.bf16 %v1073, %v1070
    %v1119 = vpack.c.bf16 %v1081, %v1078
    %v1120 = vpack.c.bf16 %v1089, %v1086
    %v1121 = vpack.c.bf16 %v1097, %v1094
    %v1122 = vpack.c.bf16 %v1105, %v1102
    %v1123 = vpack.c.bf16 %v1113, %v1110
    %1124 = vmatprep.subr.bf16.mxu0 0
    %1125 = vmatpush1.bf16.msra.mxu0 %v1116
    %1126 = vmatprep.subr.bf16.mxu0 0
    %1127 = vmatpush1.bf16.msra.mxu0 %v1117
    %1128 = vmatprep.subr.bf16.mxu0 0
    %1129 = vmatpush1.bf16.msra.mxu0 %v1118
    %1130 = vmatprep.subr.bf16.mxu0 0
    %1131 = vmatpush1.bf16.msra.mxu0 %v1119
    %1132 = vmatprep.subr.bf16.mxu0 0
    %1133 = vmatpush1.bf16.msra.mxu0 %v1120
    %1134 = vmatprep.subr.bf16.mxu0 0
    %1135 = vmatpush1.bf16.msra.mxu0 %v1121
    %1136 = vmatprep.subr.bf16.mxu0 0
    %1137 = vmatpush1.bf16.msra.mxu0 %v1122
    %1138 = vmatprep.subr.bf16.mxu0 0
    %1139 = vmatpush1.bf16.msra.mxu0 %v1123
    %1140 = vmatprep.subr.bf16.mxu0 0
    %1141 = vmatpush1.bf16.msra.mxu0 0
    %1142 = vmatprep.subr.bf16.mxu0 0
    %1143 = vmatpush1.bf16.msra.mxu0 0
    %1144 = vmatprep.subr.bf16.mxu0 0
    %1145 = vmatpush1.bf16.msra.mxu0 0
    %1146 = vmatprep.subr.bf16.mxu0 0
    %1147 = vmatpush1.bf16.msra.mxu0 0
    %1148 = vmatprep.subr.bf16.mxu0 0
    %1149 = vmatpush1.bf16.msra.mxu0 0
    %1150 = vmatprep.subr.bf16.mxu0 0
    %1151 = vmatpush1.bf16.msra.mxu0 0
    %1152 = vmatprep.subr.bf16.mxu0 0
    %1153 = vmatpush1.bf16.msra.mxu0 0
    %1154 = vmatprep.subr.bf16.mxu0 0
    %1155 = vmatpush1.bf16.msra.mxu0 0
    %1156 = vmatprep.mubr.bf16.mxu0 0
    %1157 = vmatmul.mubr.bf16.gmra.mrb[0].mxu0 %v478
    %v1158 = vpop.f32.mrb[0].mxu0
    %v1159 = vadd.f32 0.0, %v1158
    %v1160 = vpop.f32.mrb[0].mxu0
    %v1161 = vpop.f32.mrb[0].mxu0
    %v1162 = vadd.f32 0.0, %v1161
    %v1163 = vpop.f32.mrb[0].mxu0
    %1164 = vmatprep.mubr.bf16.mxu0 0
    %1165 = vmatmul.mubr.bf16.gmra.mrb[0].mxu0 %v479
    %v1166 = vpop.f32.mrb[0].mxu0
    %v1167 = vadd.f32 0.0, %v1166
    %v1168 = vpop.f32.mrb[0].mxu0
    %v1169 = vpop.f32.mrb[0].mxu0
    %v1170 = vadd.f32 0.0, %v1169
    %v1171 = vpop.f32.mrb[0].mxu0
    %1172 = vmatprep.mubr.bf16.mxu0 0
    %1173 = vmatmul.mubr.bf16.gmra.mrb[0].mxu0 %v480
    %v1174 = vpop.f32.mrb[0].mxu0
    %v1175 = vadd.f32 0.0, %v1174
    %v1176 = vpop.f32.mrb[0].mxu0
    %v1177 = vpop.f32.mrb[0].mxu0
    %v1178 = vadd.f32 0.0, %v1177
    %v1179 = vpop.f32.mrb[0].mxu0
    %1180 = vmatprep.mubr.bf16.mxu0 0
    %1181 = vmatmul.mubr.bf16.gmra.mrb[0].mxu0 %v481
    %v1182 = vpop.f32.mrb[0].mxu0
    %v1183 = vadd.f32 0.0, %v1182
    %v1184 = vpop.f32.mrb[0].mxu0
    %v1185 = vpop.f32.mrb[0].mxu0
    %v1186 = vadd.f32 0.0, %v1185
    %v1187 = vpop.f32.mrb[0].mxu0
    %1188 = vmatprep.mubr.bf16.mxu0 0
    %1189 = vmatmul.mubr.bf16.gmra.mrb[0].mxu0 %v482
    %v1190 = vpop.f32.mrb[0].mxu0
    %v1191 = vadd.f32 0.0, %v1190
    %v1192 = vpop.f32.mrb[0].mxu0
    %v1193 = vpop.f32.mrb[0].mxu0
    %v1194 = vadd.f32 0.0, %v1193
    %v1195 = vpop.f32.mrb[0].mxu0
    %1196 = vmatprep.mubr.bf16.mxu0 0
    %1197 = vmatmul.mubr.bf16.gmra.mrb[0].mxu0 %v483
    %v1198 = vpop.f32.mrb[0].mxu0
    %v1199 = vadd.f32 0.0, %v1198
    %v1200 = vpop.f32.mrb[0].mxu0
    %v1201 = vpop.f32.mrb[0].mxu0
    %v1202 = vadd.f32 0.0, %v1201
    %v1203 = vpop.f32.mrb[0].mxu0
    %1204 = vmatprep.mubr.bf16.mxu0 0
    %1205 = vmatmul.mubr.bf16.gmra.mrb[0].mxu0 %v484
    %v1206 = vpop.f32.mrb[0].mxu0
    %v1207 = vadd.f32 0.0, %v1206
    %v1208 = vpop.f32.mrb[0].mxu0
    %v1209 = vpop.f32.mrb[0].mxu0
    %v1210 = vadd.f32 0.0, %v1209
    %v1211 = vpop.f32.mrb[0].mxu0
    %1212 = vmatprep.mubr.bf16.mxu0 0
    %1213 = vmatmul.mubr.bf16.gmra.mrb[0].mxu0 %v485
    %v1214 = vpop.f32.mrb[0].mxu0
    %v1215 = vadd.f32 0.0, %v1214
    %v1216 = vpop.f32.mrb[0].mxu0
    %v1217 = vpop.f32.mrb[0].mxu0
    %v1218 = vadd.f32 0.0, %v1217
    %v1219 = vpop.f32.mrb[0].mxu0
    %1220 = vdwg.mxu0
    %v1221 = vpack.c.bf16 %v1162, %v1159
    %v1222 = vpack.c.bf16 %v1170, %v1167
    %v1223 = vpack.c.bf16 %v1178, %v1175
    %v1224 = vpack.c.bf16 %v1186, %v1183
    %v1225 = vpack.c.bf16 %v1194, %v1191
    %v1226 = vpack.c.bf16 %v1202, %v1199
    %v1227 = vpack.c.bf16 %v1210, %v1207
    %v1228 = vpack.c.bf16 %v1218, %v1215
    %1229 = vmatprep.subr.bf16.mxu0 0
    %1230 = vmatpush1.bf16.msra.mxu0 %v1221
    %1231 = vmatprep.subr.bf16.mxu0 0
    %1232 = vmatpush1.bf16.msra.mxu0 %v1222
    %1233 = vmatprep.subr.bf16.mxu0 0
    %1234 = vmatpush1.bf16.msra.mxu0 %v1223
    %1235 = vmatprep.subr.bf16.mxu0 0
    %1236 = vmatpush1.bf16.msra.mxu0 %v1224
    %1237 = vmatprep.subr.bf16.mxu0 0
    %1238 = vmatpush1.bf16.msra.mxu0 %v1225
    %1239 = vmatprep.subr.bf16.mxu0 0
    %1240 = vmatpush1.bf16.msra.mxu0 %v1226
    %1241 = vmatprep.subr.bf16.mxu0 0
    %1242 = vmatpush1.bf16.msra.mxu0 %v1227
    %1243 = vmatprep.subr.bf16.mxu0 0
    %1244 = vmatpush1.bf16.msra.mxu0 %v1228
    %1245 = vmatprep.subr.bf16.mxu0 0
    %1246 = vmatpush1.bf16.msra.mxu0 0
    %1247 = vmatprep.subr.bf16.mxu0 0
    %1248 = vmatpush1.bf16.msra.mxu0 0
    %1249 = vmatprep.subr.bf16.mxu0 0
    %1250 = vmatpush1.bf16.msra.mxu0 0
    %1251 = vmatprep.subr.bf16.mxu0 0
    %1252 = vmatpush1.bf16.msra.mxu0 0
    %1253 = vmatprep.subr.bf16.mxu0 0
    %1254 = vmatpush1.bf16.msra.mxu0 0
    %1255 = vmatprep.subr.bf16.mxu0 0
    %1256 = vmatpush1.bf16.msra.mxu0 0
    %1257 = vmatprep.subr.bf16.mxu0 0
    %1258 = vmatpush1.bf16.msra.mxu0 0
    %1259 = vmatprep.subr.bf16.mxu0 0
    %1260 = vmatpush1.bf16.msra.mxu0 0
    %1261 = vmatprep.mubr.bf16.mxu0 0
    %1262 = vmatmul.mubr.bf16.gmra.mrb[0].mxu0 %v478
    %v1263 = vpop.f32.mrb[0].mxu0
    %v1264 = vadd.f32 0.0, %v1263
    %v1265 = vpop.f32.mrb[0].mxu0
    %v1266 = vpop.f32.mrb[0].mxu0
    %v1267 = vadd.f32 0.0, %v1266
    %v1268 = vpop.f32.mrb[0].mxu0
    %1269 = vmatprep.mubr.bf16.mxu0 0
    %1270 = vmatmul.mubr.bf16.gmra.mrb[0].mxu0 %v479
    %v1271 = vpop.f32.mrb[0].mxu0
    %v1272 = vadd.f32 0.0, %v1271
    %v1273 = vpop.f32.mrb[0].mxu0
    %v1274 = vpop.f32.mrb[0].mxu0
    %v1275 = vadd.f32 0.0, %v1274
    %v1276 = vpop.f32.mrb[0].mxu0
    %1277 = vmatprep.mubr.bf16.mxu0 0
    %1278 = vmatmul.mubr.bf16.gmra.mrb[0].mxu0 %v480
    %v1279 = vpop.f32.mrb[0].mxu0
    %v1280 = vadd.f32 0.0, %v1279
    %v1281 = vpop.f32.mrb[0].mxu0
    %v1282 = vpop.f32.mrb[0].mxu0
    %v1283 = vadd.f32 0.0, %v1282
    %v1284 = vpop.f32.mrb[0].mxu0
    %1285 = vmatprep.mubr.bf16.mxu0 0
    %1286 = vmatmul.mubr.bf16.gmra.mrb[0].mxu0 %v481
    %v1287 = vpop.f32.mrb[0].mxu0
    %v1288 = vadd.f32 0.0, %v1287
    %v1289 = vpop.f32.mrb[0].mxu0
    %v1290 = vpop.f32.mrb[0].mxu0
    %v1291 = vadd.f32 0.0, %v1290
    %v1292 = vpop.f32.mrb[0].mxu0
    %1293 = vmatprep.mubr.bf16.mxu0 0
    %1294 = vmatmul.mubr.bf16.gmra.mrb[0].mxu0 %v482
    %v1295 = vpop.f32.mrb[0].mxu0
    %v1296 = vadd.f32 0.0, %v1295
    %v1297 = vpop.f32.mrb[0].mxu0
    %v1298 = vpop.f32.mrb[0].mxu0
    %v1299 = vadd.f32 0.0, %v1298
    %v1300 = vpop.f32.mrb[0].mxu0
    %1301 = vmatprep.mubr.bf16.mxu0 0
    %1302 = vmatmul.mubr.bf16.gmra.mrb[0].mxu0 %v483
    %v1303 = vpop.f32.mrb[0].mxu0
    %v1304 = vadd.f32 0.0, %v1303
    %v1305 = vpop.f32.mrb[0].mxu0
    %v1306 = vpop.f32.mrb[0].mxu0
    %v1307 = vadd.f32 0.0, %v1306
    %v1308 = vpop.f32.mrb[0].mxu0
    %1309 = vmatprep.mubr.bf16.mxu0 0
    %1310 = vmatmul.mubr.bf16.gmra.mrb[0].mxu0 %v484
    %v1311 = vpop.f32.mrb[0].mxu0
    %v1312 = vadd.f32 0.0, %v1311
    %v1313 = vpop.f32.mrb[0].mxu0
    %v1314 = vpop.f32.mrb[0].mxu0
    %v1315 = vadd.f32 0.0, %v1314
    %v1316 = vpop.f32.mrb[0].mxu0
    %1317 = vmatprep.mubr.bf16.mxu0 0
    %1318 = vmatmul.mubr.bf16.gmra.mrb[0].mxu0 %v485
    %v1319 = vpop.f32.mrb[0].mxu0
    %v1320 = vadd.f32 0.0, %v1319
    %v1321 = vpop.f32.mrb[0].mxu0
    %v1322 = vpop.f32.mrb[0].mxu0
    %v1323 = vadd.f32 0.0, %v1322
    %v1324 = vpop.f32.mrb[0].mxu0
    %1325 = vdwg.mxu0
    %v1326 = vpack.c.bf16 %v1267, %v1264
    %v1327 = vpack.c.bf16 %v1275, %v1272
    %v1328 = vpack.c.bf16 %v1283, %v1280
    %v1329 = vpack.c.bf16 %v1291, %v1288
    %v1330 = vpack.c.bf16 %v1299, %v1296
    %v1331 = vpack.c.bf16 %v1307, %v1304
    %v1332 = vpack.c.bf16 %v1315, %v1312
    %v1333 = vpack.c.bf16 %v1323, %v1320
    %1334 = vmatprep.subr.bf16.mxu0 0
    %1335 = vmatpush1.bf16.msra.mxu0 %v1326
    %1336 = vmatprep.subr.bf16.mxu0 0
    %1337 = vmatpush1.bf16.msra.mxu0 %v1327
    %1338 = vmatprep.subr.bf16.mxu0 0
    %1339 = vmatpush1.bf16.msra.mxu0 %v1328
    %1340 = vmatprep.subr.bf16.mxu0 0
    %1341 = vmatpush1.bf16.msra.mxu0 %v1329
    %1342 = vmatprep.subr.bf16.mxu0 0
    %1343 = vmatpush1.bf16.msra.mxu0 %v1330
    %1344 = vmatprep.subr.bf16.mxu0 0
    %1345 = vmatpush1.bf16.msra.mxu0 %v1331
    %1346 = vmatprep.subr.bf16.mxu0 0
    %1347 = vmatpush1.bf16.msra.mxu0 %v1332
    %1348 = vmatprep.subr.bf16.mxu0 0
    %1349 = vmatpush1.bf16.msra.mxu0 %v1333
    %1350 = vmatprep.subr.bf16.mxu0 0
    %1351 = vmatpush1.bf16.msra.mxu0 0
    %1352 = vmatprep.subr.bf16.mxu0 0
    %1353 = vmatpush1.bf16.msra.mxu0 0
    %1354 = vmatprep.subr.bf16.mxu0 0
    %1355 = vmatpush1.bf16.msra.mxu0 0
    %1356 = vmatprep.subr.bf16.mxu0 0
    %1357 = vmatpush1.bf16.msra.mxu0 0
    %1358 = vmatprep.subr.bf16.mxu0 0
    %1359 = vmatpush1.bf16.msra.mxu0 0
    %1360 = vmatprep.subr.bf16.mxu0 0
    %1361 = vmatpush1.bf16.msra.mxu0 0
    %1362 = vmatprep.subr.bf16.mxu0 0
    %1363 = vmatpush1.bf16.msra.mxu0 0
    %1364 = vmatprep.subr.bf16.mxu0 0
    %1365 = vmatpush1.bf16.msra.mxu0 0
    %1366 = vmatprep.mubr.bf16.mxu0 0
    %1367 = vmatmul.mubr.bf16.gmra.mrb[0].mxu0 %v478
    %v1368 = vpop.f32.mrb[0].mxu0
    %v1369 = vadd.f32 0.0, %v1368
    %v1370 = vpop.f32.mrb[0].mxu0
    %v1371 = vpop.f32.mrb[0].mxu0
    %v1372 = vadd.f32 0.0, %v1371
    %v1373 = vpop.f32.mrb[0].mxu0
    %1374 = vmatprep.mubr.bf16.mxu0 0
    %1375 = vmatmul.mubr.bf16.gmra.mrb[0].mxu0 %v479
    %v1376 = vpop.f32.mrb[0].mxu0
    %v1377 = vadd.f32 0.0, %v1376
    %v1378 = vpop.f32.mrb[0].mxu0
    %v1379 = vpop.f32.mrb[0].mxu0
    %v1380 = vadd.f32 0.0, %v1379
    %v1381 = vpop.f32.mrb[0].mxu0
    %1382 = vmatprep.mubr.bf16.mxu0 0
    %1383 = vmatmul.mubr.bf16.gmra.mrb[0].mxu0 %v480
    %v1384 = vpop.f32.mrb[0].mxu0
    %v1385 = vadd.f32 0.0, %v1384
    %v1386 = vpop.f32.mrb[0].mxu0
    %v1387 = vpop.f32.mrb[0].mxu0
    %v1388 = vadd.f32 0.0, %v1387
    %v1389 = vpop.f32.mrb[0].mxu0
    %1390 = vmatprep.mubr.bf16.mxu0 0
    %1391 = vmatmul.mubr.bf16.gmra.mrb[0].mxu0 %v481
    %v1392 = vpop.f32.mrb[0].mxu0
    %v1393 = vadd.f32 0.0, %v1392
    %v1394 = vpop.f32.mrb[0].mxu0
    %v1395 = vpop.f32.mrb[0].mxu0
    %v1396 = vadd.f32 0.0, %v1395
    %v1397 = vpop.f32.mrb[0].mxu0
    %1398 = vmatprep.mubr.bf16.mxu0 0
    %1399 = vmatmul.mubr.bf16.gmra.mrb[0].mxu0 %v482
    %v1400 = vpop.f32.mrb[0].mxu0
    %v1401 = vadd.f32 0.0, %v1400
    %v1402 = vpop.f32.mrb[0].mxu0
    %v1403 = vpop.f32.mrb[0].mxu0
    %v1404 = vadd.f32 0.0, %v1403
    %v1405 = vpop.f32.mrb[0].mxu0
    %1406 = vmatprep.mubr.bf16.mxu0 0
    %1407 = vmatmul.mubr.bf16.gmra.mrb[0].mxu0 %v483
    %v1408 = vpop.f32.mrb[0].mxu0
    %v1409 = vadd.f32 0.0, %v1408
    %v1410 = vpop.f32.mrb[0].mxu0
    %v1411 = vpop.f32.mrb[0].mxu0
    %v1412 = vadd.f32 0.0, %v1411
    %v1413 = vpop.f32.mrb[0].mxu0
    %1414 = vmatprep.mubr.bf16.mxu0 0
    %1415 = vmatmul.mubr.bf16.gmra.mrb[0].mxu0 %v484
    %v1416 = vpop.f32.mrb[0].mxu0
    %v1417 = vadd.f32 0.0, %v1416
    %v1418 = vpop.f32.mrb[0].mxu0
    %v1419 = vpop.f32.mrb[0].mxu0
    %v1420 = vadd.f32 0.0, %v1419
    %v1421 = vpop.f32.mrb[0].mxu0
    %1422 = vmatprep.mubr.bf16.mxu0 0
    %1423 = vmatmul.mubr.bf16.gmra.mrb[0].mxu0 %v485
    %v1424 = vpop.f32.mrb[0].mxu0
    %v1425 = vadd.f32 0.0, %v1424
    %v1426 = vpop.f32.mrb[0].mxu0
    %v1427 = vpop.f32.mrb[0].mxu0
    %v1428 = vadd.f32 0.0, %v1427
    %v1429 = vpop.f32.mrb[0].mxu0
    %1430 = vdwg.mxu0
    %v1431 = vpack.c.bf16 %v1372, %v1369
    %v1432 = vpack.c.bf16 %v1380, %v1377
    %v1433 = vpack.c.bf16 %v1388, %v1385
    %v1434 = vpack.c.bf16 %v1396, %v1393
    %v1435 = vpack.c.bf16 %v1404, %v1401
    %v1436 = vpack.c.bf16 %v1412, %v1409
    %v1437 = vpack.c.bf16 %v1420, %v1417
    %v1438 = vpack.c.bf16 %v1428, %v1425
    %1439 = vmatprep.subr.bf16.mxu0 0
    %1440 = vmatpush1.bf16.msra.mxu0 %v1431
    %1441 = vmatprep.subr.bf16.mxu0 0
    %1442 = vmatpush1.bf16.msra.mxu0 %v1432
    %1443 = vmatprep.subr.bf16.mxu0 0
    %1444 = vmatpush1.bf16.msra.mxu0 %v1433
    %1445 = vmatprep.subr.bf16.mxu0 0
    %1446 = vmatpush1.bf16.msra.mxu0 %v1434
    %1447 = vmatprep.subr.bf16.mxu0 0
    %1448 = vmatpush1.bf16.msra.mxu0 %v1435
    %1449 = vmatprep.subr.bf16.mxu0 0
    %1450 = vmatpush1.bf16.msra.mxu0 %v1436
    %1451 = vmatprep.subr.bf16.mxu0 0
    %1452 = vmatpush1.bf16.msra.mxu0 %v1437
    %1453 = vmatprep.subr.bf16.mxu0 0
    %1454 = vmatpush1.bf16.msra.mxu0 %v1438
    %1455 = vmatprep.subr.bf16.mxu0 0
    %1456 = vmatpush1.bf16.msra.mxu0 0
    %1457 = vmatprep.subr.bf16.mxu0 0
    %1458 = vmatpush1.bf16.msra.mxu0 0
    %1459 = vmatprep.subr.bf16.mxu0 0
    %1460 = vmatpush1.bf16.msra.mxu0 0
    %1461 = vmatprep.subr.bf16.mxu0 0
    %1462 = vmatpush1.bf16.msra.mxu0 0
    %1463 = vmatprep.subr.bf16.mxu0 0
    %1464 = vmatpush1.bf16.msra.mxu0 0
    %1465 = vmatprep.subr.bf16.mxu0 0
    %1466 = vmatpush1.bf16.msra.mxu0 0
    %1467 = vmatprep.subr.bf16.mxu0 0
    %1468 = vmatpush1.bf16.msra.mxu0 0
    %1469 = vmatprep.subr.bf16.mxu0 0
    %1470 = vmatpush1.bf16.msra.mxu0 0
    %1471 = vmatprep.mubr.bf16.mxu0 0
    %1472 = vmatmul.mubr.bf16.gmra.mrb[0].mxu0 %v478
    %v1473 = vpop.f32.mrb[0].mxu0
    %v1474 = vadd.f32 0.0, %v1473
    %v1475 = vpop.f32.mrb[0].mxu0
    %v1476 = vpop.f32.mrb[0].mxu0
    %v1477 = vadd.f32 0.0, %v1476
    %v1478 = vpop.f32.mrb[0].mxu0
    %1479 = vmatprep.mubr.bf16.mxu0 0
    %1480 = vmatmul.mubr.bf16.gmra.mrb[0].mxu0 %v479
    %v1481 = vpop.f32.mrb[0].mxu0
    %v1482 = vadd.f32 0.0, %v1481
    %v1483 = vpop.f32.mrb[0].mxu0
    %v1484 = vpop.f32.mrb[0].mxu0
    %v1485 = vadd.f32 0.0, %v1484
    %v1486 = vpop.f32.mrb[0].mxu0
    %1487 = vmatprep.mubr.bf16.mxu0 0
    %1488 = vmatmul.mubr.bf16.gmra.mrb[0].mxu0 %v480
    %v1489 = vpop.f32.mrb[0].mxu0
    %v1490 = vadd.f32 0.0, %v1489
    %v1491 = vpop.f32.mrb[0].mxu0
    %v1492 = vpop.f32.mrb[0].mxu0
    %v1493 = vadd.f32 0.0, %v1492
    %v1494 = vpop.f32.mrb[0].mxu0
    %1495 = vmatprep.mubr.bf16.mxu0 0
    %1496 = vmatmul.mubr.bf16.gmra.mrb[0].mxu0 %v481
    %v1497 = vpop.f32.mrb[0].mxu0
    %v1498 = vadd.f32 0.0, %v1497
    %v1499 = vpop.f32.mrb[0].mxu0
    %v1500 = vpop.f32.mrb[0].mxu0
    %v1501 = vadd.f32 0.0, %v1500
    %v1502 = vpop.f32.mrb[0].mxu0
    %1503 = vmatprep.mubr.bf16.mxu0 0
    %1504 = vmatmul.mubr.bf16.gmra.mrb[0].mxu0 %v482
    %v1505 = vpop.f32.mrb[0].mxu0
    %v1506 = vadd.f32 0.0, %v1505
    %v1507 = vpop.f32.mrb[0].mxu0
    %v1508 = vpop.f32.mrb[0].mxu0
    %v1509 = vadd.f32 0.0, %v1508
    %v1510 = vpop.f32.mrb[0].mxu0
    %1511 = vmatprep.mubr.bf16.mxu0 0
    %1512 = vmatmul.mubr.bf16.gmra.mrb[0].mxu0 %v483
    %v1513 = vpop.f32.mrb[0].mxu0
    %v1514 = vadd.f32 0.0, %v1513
    %v1515 = vpop.f32.mrb[0].mxu0
    %v1516 = vpop.f32.mrb[0].mxu0
    %v1517 = vadd.f32 0.0, %v1516
    %v1518 = vpop.f32.mrb[0].mxu0
    %1519 = vmatprep.mubr.bf16.mxu0 0
    %1520 = vmatmul.mubr.bf16.gmra.mrb[0].mxu0 %v484
    %v1521 = vpop.f32.mrb[0].mxu0
    %v1522 = vadd.f32 0.0, %v1521
    %v1523 = vpop.f32.mrb[0].mxu0
    %v1524 = vpop.f32.mrb[0].mxu0
    %v1525 = vadd.f32 0.0, %v1524
    %v1526 = vpop.f32.mrb[0].mxu0
    %1527 = vmatprep.mubr.bf16.mxu0 0
    %1528 = vmatmul.mubr.bf16.gmra.mrb[0].mxu0 %v485
    %v1529 = vpop.f32.mrb[0].mxu0
    %v1530 = vadd.f32 0.0, %v1529
    %v1531 = vpop.f32.mrb[0].mxu0
    %v1532 = vpop.f32.mrb[0].mxu0
    %v1533 = vadd.f32 0.0, %v1532
    %v1534 = vpop.f32.mrb[0].mxu0
    %1535 = vdwg.mxu0
    %1536 = vst [vmem:[%s6] sm:$0xff] %v1474
    %1537 = vst [vmem:[%s6 + $0x8] sm:$0xff] %v1477
    %1538 = vst [vmem:[%s6 + $0x10] sm:$0xff] %v1482
    %1539 = vst [vmem:[%s6 + $0x18] sm:$0xff] %v1485
    %1540 = vst [vmem:[%s6 + $0x20] sm:$0xff] %v1490
    %1541 = vst [vmem:[%s6 + $0x28] sm:$0xff] %v1493
    %1542 = vst [vmem:[%s6 + $0x30] sm:$0xff] %v1498
    %1543 = vst [vmem:[%s6 + $0x38] sm:$0xff] %v1501
    %1544 = vst [vmem:[%s6 + $0x40] sm:$0xff] %v1506
    %1545 = vst [vmem:[%s6 + $0x48] sm:$0xff] %v1509
    %1546 = vst [vmem:[%s6 + $0x50] sm:$0xff] %v1514
    %1547 = vst [vmem:[%s6 + $0x58] sm:$0xff] %v1517
    %1548 = vst [vmem:[%s6 + $0x60] sm:$0xff] %v1522
    %1549 = vst [vmem:[%s6 + $0x68] sm:$0xff] %v1525
    %1550 = vst [vmem:[%s6 + $0x70] sm:$0xff] %v1530
    %1551 = vst [vmem:[%s6 + $0x78] sm:$0xff] %v1533
    // Predicated region
    $region30: #{appnp_forward.1} parent=1 // pred_check
      _
    $region31: #{appnp_forward.1} parent=1 // pred_check_branch
      %1553 = sbr.rel (0) target = $region33
    $region32: #{appnp_forward.1} parent=1 // pred_region
      _
    $region33: #{appnp_forward.1} parent=1 // pred_fallthru
      _
    // Predicated region
    $region34: #{appnp_forward.1} parent=1 // pred_check
      _
    $region35: #{appnp_forward.1} parent=1 // pred_check_branch
      %1555 = sbr.rel (0) target = $region37
    $region36: #{appnp_forward.1} parent=1 // pred_region
      _
    $region37: #{appnp_forward.1} parent=1 // pred_fallthru
      _
    %1556 = vsyncpa [#allocation3], 1

</llo_original>
